<compile_context>
chip_gen: v6e
topology: v6e:2x2x1
jax: 0.10.0
libtpu: 0.0.40
codegen_flags: <defaults>
</compile_context>

<pallas_src>
import functools

import jax
import jax.numpy as jnp
from jax import lax
from jax.experimental import pallas as pl
from jax.experimental.pallas import tpu as pltpu


# ----------------------------------------------------------------------------
# Fused Pallas kernel: whole stack (conv3x3 + width-mask + InstanceNorm + LReLU
# per layer) for one batch sample.
# ----------------------------------------------------------------------------
def _stack_kernel(*refs, H, W, cins, Cout, eps, slope, cdtype):
    # refs layout:
    #   refs[0]                x_ref    (1, cins[0], H*W)   input sample (f32)
    #   refs[1+4l .. 4+4l]     layer l: w_ref    (9, Cout, cins[l])  taps (cdtype)
    #                                   gm_ref   (Cout, 1)  gamma * mask  (f32)
    #                                   m2_ref   (Cout, 1)  mask**2       (f32)
    #                                   beta_ref (Cout, 1)  IN beta       (f32)
    #   refs[1+4L]             o_ref    (1, Cout, H*W)      output (f32)
    #   refs[2+4L]             xpad_ref VMEM (max_cin, (H+2)*W + 2) staging
    L = len(cins)
    x_ref = refs[0]
    o_ref = refs[1 + 4 * L]
    xpad_ref = refs[2 + 4 * L]
    HW = H * W
    PADL = (H + 2) * W + 2
    Cmax = xpad_ref.shape[0]

    # Zero the vertical-pad regions once (top pad row, bottom pad row, and the
    # two 1-element guards); interior rows are rewritten per layer.
    zeros_edge = jnp.zeros((Cmax, W + 1), cdtype)
    xpad_ref[:, 0:W + 1] = zeros_edge                     # left guard + top pad row
    xpad_ref[:, 1 + W + HW:PADL] = zeros_edge             # bottom pad row + right guard

    act = x_ref[0].astype(cdtype)                         # (cins[0], HW)

    for l in range(L):
        Cin = cins[l]
        w_ref, gm_ref, m2_ref, beta_ref = refs[1 + 4 * l:5 + 4 * l]

        # Stage current activation into the H-padded flat buffer (interior).
        xpad_ref[0:Cin, 1 + W:1 + W + HW] = act

        # Column-validity masks, hoisted out of the 9-tap loop (multiplicative,
        # compute dtype).  They kill the horizontal row wrap-around of the flat
        # HW layout; vertical out-of-range reads hit the zero pad rows.
        col = lax.broadcasted_iota(jnp.int32, (Cin, HW), 1) % W
        left_m = (col >= 1).astype(cdtype)                # tap reads column x-1
        right_m = (col <= W - 2).astype(cdtype)           # tap reads column x+1

        # 3x3 conv as 9 channel-matmuls accumulated in f32 on the MXU.
        # Tap (dy, dx) of output pixel p = y*W + x reads xpad[p + dy*W + dx].
        acc = None
        for t in range(9):                                # static unroll
            dy, dx = divmod(t, 3)
            start = dy * W + dx
            patch = xpad_ref[0:Cin, start:start + HW]     # (Cin, HW)
            if dx == 0:
                patch = patch * left_m
            elif dx == 2:
                patch = patch * right_m
            part = jnp.dot(w_ref[t], patch,               # (Cout,Cin)@(Cin,HW)
                           preferred_element_type=jnp.float32)
            acc = part if acc is None else acc + part     # (Cout, HW) f32

        # InstanceNorm with EXACT width-mask semantics:
        #   out = (gamma*m)*(conv - mean_conv)*rsqrt(m^2*var_conv + eps) + beta
        # (conv bias cancels exactly; mask never has to touch the activation).
        inv_n = 1.0 / HW
        mean = jnp.sum(acc, axis=1, keepdims=True) * inv_n
        cen = acc - mean
        var = jnp.sum(cen * cen, axis=1, keepdims=True) * inv_n
        scale = gm_ref[...] * lax.rsqrt(m2_ref[...] * var + eps)   # (Cout, 1)
        y = cen * scale + beta_ref[...]
        y = jnp.where(y >= 0, y, slope * y)               # LeakyReLU

        if l + 1 < L:
            act = y.astype(cdtype)                        # stays on-chip
        else:
            o_ref[...] = y.reshape(1, Cout, HW).astype(o_ref.dtype)  # lane-dense


def adaptive_stacked_conv_forward(params_list, x_nchw, tau, gumbel_keys, *,
                                  eps=1e-5, slope=0.01,
                                  compute_dtype=jnp.bfloat16):
    """Forward of AdaptiveWidthStackedConvLayers (returns the last block's
    output, like the PyTorch module).  x_nchw: (N, Cin, H, W) float32."""
    N, Cin0, H, W = x_nchw.shape
    HW = H * W
    Cout = int(params_list[0]["w9"].shape[-1])
    cins = tuple(int(p["w9"].shape[1]) for p in params_list)
    assert cins[0] == Cin0 and all(c == Cout for c in cins[1:])
    assert len(params_list) == len(gumbel_keys)

    x_flat = x_nchw.reshape(N, Cin0, HW)          # free reshape (row-major NCHW)

    inputs = [x_flat]
    in_specs = [pl.BlockSpec((1, Cin0, HW), lambda n: (n, 0, 0))]
    for p, k in zip(params_list, gumbel_keys):
        cin = int(p["w9"].shape[1])
        weights = gumbel_softmax(k, p["alphas"], tau)            # (5,)
        mask_vec = weights @ p["masks"]                          # (Cout,)
        # Conv taps reordered to (tap, Cout, Cin) so the kernel can index w[t].
        w_taps = jnp.transpose(p["w9"], (0, 2, 1)).astype(compute_dtype)
        gm = (p["gamma"] * mask_vec).astype(jnp.float32).reshape(Cout, 1)
        m2 = (mask_vec * mask_vec).astype(jnp.float32).reshape(Cout, 1)
        beta = p["beta"].astype(jnp.float32).reshape(Cout, 1)
        # NOTE: conv bias is not passed — it cancels exactly in InstanceNorm.
        inputs += [w_taps, gm, m2, beta]
        in_specs += [
            pl.BlockSpec((9, Cout, cin), lambda n: (0, 0, 0)),
            pl.BlockSpec((Cout, 1), lambda n: (0, 0)),
            pl.BlockSpec((Cout, 1), lambda n: (0, 0)),
            pl.BlockSpec((Cout, 1), lambda n: (0, 0)),
        ]

    kernel = functools.partial(_stack_kernel, H=H, W=W, cins=cins, Cout=Cout,
                               eps=eps, slope=slope, cdtype=compute_dtype)

    out = pl.pallas_call(
        kernel,
        out_shape=jax.ShapeDtypeStruct((N, Cout, HW), jnp.float32),
        grid_spec=pltpu.PrefetchScalarGridSpec(
            num_scalar_prefetch=0,
            grid=(N,),                                   # one sample per step
            in_specs=in_specs,
            out_specs=pl.BlockSpec((1, Cout, HW), lambda n: (n, 0, 0)),
            scratch_shapes=[
                # H-padded flat staging buffer, sized for the widest layer.
                pltpu.VMEM((max(cins), (H + 2) * W + 2), compute_dtype),
            ],
        ),
        compiler_params=pltpu.CompilerParams(
            # Batch across both v7x TensorCores; cheap no-op split on v5e/v6e.
            dimension_semantics=("parallel",),
            # Footprint ~0.2 MiB: no vmem_limit override needed on any gen.
        ),
    )(*inputs)
    return out.reshape(N, Cout, H, W)


# ----------------------------------------------------------------------------
# Parameter construction + glue (plain JAX)
# ----------------------------------------------------------------------------
def gumbel_softmax(key, logits, tau):
    u = jax.random.uniform(key, logits.shape, minval=1e-10, maxval=1.0)
    g = -jnp.log(-jnp.log(u))
    return jax.nn.softmax((logits + g) / tau, axis=-1)


def make_width_masks(max_c):
    gap = max_c // 6
    min_c = max_c // 3
    channel_map = list(range(min_c, max_c + 1, gap))
    assert len(channel_map) == 5
    masks = jnp.zeros((5, max_c), jnp.float32)
    for i, nc in enumerate(channel_map):
        masks = masks.at[i, :nc].set(1.0)
    return masks


def init_block_params(key, cin, cout):
    kw, kb = jax.random.split(key)
    fan_in = cin * 9
    w = jax.random.normal(kw, (3, 3, cin, cout), jnp.float32) * (1.0 / fan_in) ** 0.5
    b = jax.random.normal(kb, (cout,), jnp.float32) * 0.01
    return {
        "w9": w.reshape(9, cin, cout),               # tap-major (t = ky*3 + kx)
        "bias": b,                                   # used only by the reference
        "alphas": jnp.zeros((5,), jnp.float32),      # as in _initialize_alphas
        "masks": make_width_masks(cout),             # as in _initialize_masks
        "gamma": jnp.ones((cout,), jnp.float32),     # InstanceNorm affine init
        "beta": jnp.zeros((cout,), jnp.float32),
    }
# TODO(synk): dropout omitted — nnU-Net defaults use p=0 (self.dropout is None).


# ----------------------------------------------------------------------------
# Pure-JAX reference (quantizes matmul operands the same way for fair checks)
# ----------------------------------------------------------------------------
def _ref_block(x_nchw, p, mask_vec, eps=1e-5, slope=0.01,
               compute_dtype=jnp.float32):
    N, Cin, H, W = x_nchw.shape
    Cout = p["w9"].shape[-1]
    x = jnp.transpose(x_nchw, (0, 2, 3, 1))                    # NHWC
    w = p["w9"].reshape(3, 3, Cin, Cout)
    if compute_dtype != jnp.float32:
        x = x.astype(compute_dtype).astype(jnp.float32)
        w = w.astype(compute_dtype).astype(jnp.float32)
    y = lax.conv_general_dilated(x, w, (1, 1), ((1, 1), (1, 1)),
                                 dimension_numbers=("NHWC", "HWIO", "NHWC"))
    y = y + p["bias"]
    y = y * mask_vec
    mean = jnp.mean(y, axis=(1, 2), keepdims=True)
    var = jnp.mean((y - mean) ** 2, axis=(1, 2), keepdims=True)
    y = (y - mean) * lax.rsqrt(var + eps) * p["gamma"] + p["beta"]
    y = jnp.where(y >= 0, y, slope * y)
    return jnp.transpose(y, (0, 3, 1, 2))                      # back to NCHW


def _ref_forward(params_list, x_nchw, tau, gumbel_keys, *, compute_dtype=jnp.float32):
    out = x_nchw
    for p, k in zip(params_list, gumbel_keys):
        weights = gumbel_softmax(k, p["alphas"], tau)
        mask_vec = weights @ p["masks"]
        out = _ref_block(out, p, mask_vec, compute_dtype=compute_dtype)
    return out


# ----------------------------------------------------------------------------
if __name__ == "__main__":
    key = jax.random.PRNGKey(0)

    batch, in_c, out_c, H, W = 2, 4, 12, 16, 16   # out_c divisible by 6 -> 5 widths
    num_convs = 2
    tau = 1.0

    k_x, k_p1, k_p2, k_g1, k_g2 = jax.random.split(key, 5)
    x = jax.random.normal(k_x, (batch, in_c, H, W), jnp.float32)   # NCHW like PyTorch

    params = [
        init_block_params(k_p1, in_c, out_c),
        init_block_params(k_p2, out_c, out_c),
    ][:num_convs]
    gkeys = [k_g1, k_g2][:num_convs]

    # Fast path: bf16 MXU operands, f32 accumulation / norm math.
    out_bf16 = jax.block_until_ready(
        adaptive_stacked_conv_forward(params, x, tau, gkeys,
                                      compute_dtype=jnp.bfloat16))
    ref_bf16 = jax.block_until_ready(
        _ref_forward(params, x, tau, gkeys, compute_dtype=jnp.bfloat16))
    assert out_bf16.shape == (batch, out_c, H, W)
    assert jnp.allclose(out_bf16, ref_bf16, atol=1e-2, rtol=1e-2), \
        "bf16 path mismatch vs reference"

    # f32 compute path.  Tolerance is looser than machine-eps because the MXU
    # f32 precision mode of a Pallas dot and of XLA's conv may differ (both are
    # within ~0.5% of true f32); the math itself is the exact module formula.
    out_f32 = jax.block_until_ready(
        adaptive_stacked_conv_forward(params, x, tau, gkeys,
                                      compute_dtype=jnp.float32))
    ref_f32 = jax.block_until_ready(
        _ref_forward(params, x, tau, gkeys, compute_dtype=jnp.float32))
    assert jnp.allclose(out_f32, ref_f32, atol=2e-2, rtol=2e-2), \
        "f32 path mismatch vs reference"

    print("KERNEL_OK")
</pallas_src>

<mosaic_0001>
module attributes {stable_mosaic.version = 11 : i64} {
  func.func @_stack_kernel(%arg0: i32, %arg1: memref<1x4x256xf32, #tpu.memory_space<vmem>>, %arg2: memref<9x12x4xbf16, #tpu.memory_space<vmem>>, %arg3: memref<12x1xf32, #tpu.memory_space<vmem>>, %arg4: memref<12x1xf32, #tpu.memory_space<vmem>>, %arg5: memref<12x1xf32, #tpu.memory_space<vmem>>, %arg6: memref<9x12x12xbf16, #tpu.memory_space<vmem>>, %arg7: memref<12x1xf32, #tpu.memory_space<vmem>>, %arg8: memref<12x1xf32, #tpu.memory_space<vmem>>, %arg9: memref<12x1xf32, #tpu.memory_space<vmem>>, %arg10: memref<1x12x256xf32, #tpu.memory_space<vmem>>, %arg11: memref<12x290xbf16, #tpu.memory_space<vmem>>) attributes {dimension_semantics = [#tpu.dimension_semantics<parallel>], iteration_bounds = array<i64: 2>, scalar_prefetch = 0 : i64, scratch_operands = 1 : i64, tpu.core_type = #tpu.core_type<tc>, window_params = [{transform_indices = @transform_0, window_bounds = array<i64: 1, 4, 256>}, {pipeline_mode = #tpu.pipeline_mode<synchronous>, transform_indices = @transform_1, window_bounds = array<i64: 9, 12, 4>}, {pipeline_mode = #tpu.pipeline_mode<synchronous>, transform_indices = @transform_2, window_bounds = array<i64: 12, 1>}, {pipeline_mode = #tpu.pipeline_mode<synchronous>, transform_indices = @transform_3, window_bounds = array<i64: 12, 1>}, {pipeline_mode = #tpu.pipeline_mode<synchronous>, transform_indices = @transform_4, window_bounds = array<i64: 12, 1>}, {pipeline_mode = #tpu.pipeline_mode<synchronous>, transform_indices = @transform_5, window_bounds = array<i64: 9, 12, 12>}, {pipeline_mode = #tpu.pipeline_mode<synchronous>, transform_indices = @transform_6, window_bounds = array<i64: 12, 1>}, {pipeline_mode = #tpu.pipeline_mode<synchronous>, transform_indices = @transform_7, window_bounds = array<i64: 12, 1>}, {pipeline_mode = #tpu.pipeline_mode<synchronous>, transform_indices = @transform_8, window_bounds = array<i64: 12, 1>}, {transform_indices = @transform_9, window_bounds = array<i64: 1, 12, 256>}]} {
    %cst = arith.constant 0.000000e+00 : bf16
    %0 = vector.broadcast %cst : bf16 to vector<12x17xbf16>
    %c0 = arith.constant 0 : index
    %c0_0 = arith.constant 0 : index
    %1 = vector.load %arg11[%c0, %c0_0] : memref<12x290xbf16, #tpu.memory_space<vmem>>, vector<12x17xbf16>
    tpu.vector_store %arg11[%c0, %c0_0], %0 {strides = array<i32>} : memref<12x290xbf16, #tpu.memory_space<vmem>>, vector<12x17xbf16>,
    %c0_1 = arith.constant 0 : index
    %c273 = arith.constant 273 : index
    %2 = vector.load %arg11[%c0_1, %c273] : memref<12x290xbf16, #tpu.memory_space<vmem>>, vector<12x17xbf16>
    tpu.vector_store %arg11[%c0_1, %c273], %0 {strides = array<i32>} : memref<12x290xbf16, #tpu.memory_space<vmem>>, vector<12x17xbf16>,
    %c0_2 = arith.constant 0 : index
    %c0_3 = arith.constant 0 : index
    %c0_4 = arith.constant 0 : index
    %3 = vector.load %arg1[%c0_2, %c0_3, %c0_4] : memref<1x4x256xf32, #tpu.memory_space<vmem>>, vector<1x4x256xf32>
    %4 = vector.shape_cast %3 : vector<1x4x256xf32> to vector<4x256xf32>
    %5 = arith.truncf %4 : vector<4x256xf32> to vector<4x256xbf16>
    %c0_5 = arith.constant 0 : index
    %c17 = arith.constant 17 : index
    %6 = vector.load %arg11[%c0_5, %c17] : memref<12x290xbf16, #tpu.memory_space<vmem>>, vector<4x256xbf16>
    tpu.vector_store %arg11[%c0_5, %c17], %5 {strides = array<i32>} : memref<12x290xbf16, #tpu.memory_space<vmem>>, vector<4x256xbf16>,
    %7 = tpu.iota {dimensions = array<i32: 1>} : vector<4x256xi32>
    %c16_i32 = arith.constant 16 : i32
    %c0_i32 = arith.constant 0 : i32
    %8 = arith.cmpi eq, %c16_i32, %c0_i32 : i32
    %c1_i32 = arith.constant 1 : i32
    %9 = arith.select %8, %c1_i32, %c16_i32 : i32
    %10 = vector.broadcast %9 : i32 to vector<4x256xi32>
    %11 = arith.remsi %7, %10 : vector<4x256xi32>
    %c0_i32_6 = arith.constant 0 : i32
    %12 = vector.broadcast %c0_i32_6 : i32 to vector<4x256xi32>
    %13 = arith.cmpi ne, %11, %12 : vector<4x256xi32>
    %c0_i32_7 = arith.constant 0 : i32
    %14 = vector.broadcast %c0_i32_7 : i32 to vector<4x256xi32>
    %15 = arith.cmpi slt, %11, %14 : vector<4x256xi32>
    %c0_i32_8 = arith.constant 0 : i32
    %16 = arith.cmpi slt, %9, %c0_i32_8 : i32
    %17 = vector.broadcast %16 : i1 to vector<4x256xi1>
    %18 = vector.broadcast %17 : vector<4x256xi1> to vector<4x256xi1>
    %19 = arith.xori %15, %18 : vector<4x256xi1>
    %20 = arith.andi %19, %13 : vector<4x256xi1>
    %21 = vector.broadcast %9 : i32 to vector<4x256xi32>
    %22 = arith.addi %11, %21 : vector<4x256xi32>
    %23 = arith.select %20, %22, %11 : vector<4x256xi1>, vector<4x256xi32>
    %c1_i32_9 = arith.constant 1 : i32
    %24 = vector.broadcast %c1_i32_9 : i32 to vector<4x256xi32>
    %25 = arith.cmpi sge, %23, %24 : vector<4x256xi32>
    %26 = arith.extui %25 : vector<4x256xi1> to vector<4x256xi32>
    %27 = arith.sitofp %26 : vector<4x256xi32> to vector<4x256xf32>
    %28 = arith.truncf %27 : vector<4x256xf32> to vector<4x256xbf16>
    %c14_i32 = arith.constant 14 : i32
    %29 = vector.broadcast %c14_i32 : i32 to vector<4x256xi32>
    %30 = arith.cmpi sle, %23, %29 : vector<4x256xi32>
    %31 = arith.extui %30 : vector<4x256xi1> to vector<4x256xi32>
    %32 = arith.sitofp %31 : vector<4x256xi32> to vector<4x256xf32>
    %33 = arith.truncf %32 : vector<4x256xf32> to vector<4x256xbf16>
    %c0_10 = arith.constant 0 : index
    %c0_11 = arith.constant 0 : index
    %34 = vector.load %arg11[%c0_10, %c0_11] : memref<12x290xbf16, #tpu.memory_space<vmem>>, vector<4x256xbf16>
    %35 = arith.mulf %34, %28 : vector<4x256xbf16>
    %c0_12 = arith.constant 0 : index
    %c0_13 = arith.constant 0 : index
    %c0_14 = arith.constant 0 : index
    %36 = vector.load %arg2[%c0_12, %c0_13, %c0_14] : memref<9x12x4xbf16, #tpu.memory_space<vmem>>, vector<1x12x4xbf16>
    %37 = vector.shape_cast %36 : vector<1x12x4xbf16> to vector<12x4xbf16>
    %cst_15 = arith.constant dense<0.000000e+00> : vector<12x256xf32>
    %38 = tpu.matmul %37, %35, %cst_15 {dimension_numbers = #tpu.dot_dimension_numbers<[1], [0], [0], [1], [0, 0, 1, 1], [], []>} : vector<12x4xbf16>, vector<4x256xbf16>, vector<12x256xf32> -> vector<12x256xf32>
    %c0_16 = arith.constant 0 : index
    %c1 = arith.constant 1 : index
    %39 = vector.load %arg11[%c0_16, %c1] : memref<12x290xbf16, #tpu.memory_space<vmem>>, vector<4x256xbf16>
    %c1_17 = arith.constant 1 : index
    %c0_18 = arith.constant 0 : index
    %c0_19 = arith.constant 0 : index
    %40 = vector.load %arg2[%c1_17, %c0_18, %c0_19] : memref<9x12x4xbf16, #tpu.memory_space<vmem>>, vector<1x12x4xbf16>
    %41 = vector.shape_cast %40 : vector<1x12x4xbf16> to vector<12x4xbf16>
    %cst_20 = arith.constant dense<0.000000e+00> : vector<12x256xf32>
    %42 = tpu.matmul %41, %39, %cst_20 {dimension_numbers = #tpu.dot_dimension_numbers<[1], [0], [0], [1], [0, 0, 1, 1], [], []>} : vector<12x4xbf16>, vector<4x256xbf16>, vector<12x256xf32> -> vector<12x256xf32>
    %43 = arith.addf %38, %42 : vector<12x256xf32>
    %c0_21 = arith.constant 0 : index
    %c2 = arith.constant 2 : index
    %44 = vector.load %arg11[%c0_21, %c2] : memref<12x290xbf16, #tpu.memory_space<vmem>>, vector<4x256xbf16>
    %45 = arith.mulf %44, %33 : vector<4x256xbf16>
    %c2_22 = arith.constant 2 : index
    %c0_23 = arith.constant 0 : index
    %c0_24 = arith.constant 0 : index
    %46 = vector.load %arg2[%c2_22, %c0_23, %c0_24] : memref<9x12x4xbf16, #tpu.memory_space<vmem>>, vector<1x12x4xbf16>
    %47 = vector.shape_cast %46 : vector<1x12x4xbf16> to vector<12x4xbf16>
    %cst_25 = arith.constant dense<0.000000e+00> : vector<12x256xf32>
    %48 = tpu.matmul %47, %45, %cst_25 {dimension_numbers = #tpu.dot_dimension_numbers<[1], [0], [0], [1], [0, 0, 1, 1], [], []>} : vector<12x4xbf16>, vector<4x256xbf16>, vector<12x256xf32> -> vector<12x256xf32>
    %49 = arith.addf %43, %48 : vector<12x256xf32>
    %c0_26 = arith.constant 0 : index
    %c16 = arith.constant 16 : index
    %50 = vector.load %arg11[%c0_26, %c16] : memref<12x290xbf16, #tpu.memory_space<vmem>>, vector<4x256xbf16>
    %51 = arith.mulf %50, %28 : vector<4x256xbf16>
    %c3 = arith.constant 3 : index
    %c0_27 = arith.constant 0 : index
    %c0_28 = arith.constant 0 : index
    %52 = vector.load %arg2[%c3, %c0_27, %c0_28] : memref<9x12x4xbf16, #tpu.memory_space<vmem>>, vector<1x12x4xbf16>
    %53 = vector.shape_cast %52 : vector<1x12x4xbf16> to vector<12x4xbf16>
    %cst_29 = arith.constant dense<0.000000e+00> : vector<12x256xf32>
    %54 = tpu.matmul %53, %51, %cst_29 {dimension_numbers = #tpu.dot_dimension_numbers<[1], [0], [0], [1], [0, 0, 1, 1], [], []>} : vector<12x4xbf16>, vector<4x256xbf16>, vector<12x256xf32> -> vector<12x256xf32>
    %55 = arith.addf %49, %54 : vector<12x256xf32>
    %c0_30 = arith.constant 0 : index
    %c17_31 = arith.constant 17 : index
    %56 = vector.load %arg11[%c0_30, %c17_31] : memref<12x290xbf16, #tpu.memory_space<vmem>>, vector<4x256xbf16>
    %c4 = arith.constant 4 : index
    %c0_32 = arith.constant 0 : index
    %c0_33 = arith.constant 0 : index
    %57 = vector.load %arg2[%c4, %c0_32, %c0_33] : memref<9x12x4xbf16, #tpu.memory_space<vmem>>, vector<1x12x4xbf16>
    %58 = vector.shape_cast %57 : vector<1x12x4xbf16> to vector<12x4xbf16>
    %cst_34 = arith.constant dense<0.000000e+00> : vector<12x256xf32>
    %59 = tpu.matmul %58, %56, %cst_34 {dimension_numbers = #tpu.dot_dimension_numbers<[1], [0], [0], [1], [0, 0, 1, 1], [], []>} : vector<12x4xbf16>, vector<4x256xbf16>, vector<12x256xf32> -> vector<12x256xf32>
    %60 = arith.addf %55, %59 : vector<12x256xf32>
    %c0_35 = arith.constant 0 : index
    %c18 = arith.constant 18 : index
    %61 = vector.load %arg11[%c0_35, %c18] : memref<12x290xbf16, #tpu.memory_space<vmem>>, vector<4x256xbf16>
    %62 = arith.mulf %61, %33 : vector<4x256xbf16>
    %c5 = arith.constant 5 : index
    %c0_36 = arith.constant 0 : index
    %c0_37 = arith.constant 0 : index
    %63 = vector.load %arg2[%c5, %c0_36, %c0_37] : memref<9x12x4xbf16, #tpu.memory_space<vmem>>, vector<1x12x4xbf16>
    %64 = vector.shape_cast %63 : vector<1x12x4xbf16> to vector<12x4xbf16>
    %cst_38 = arith.constant dense<0.000000e+00> : vector<12x256xf32>
    %65 = tpu.matmul %64, %62, %cst_38 {dimension_numbers = #tpu.dot_dimension_numbers<[1], [0], [0], [1], [0, 0, 1, 1], [], []>} : vector<12x4xbf16>, vector<4x256xbf16>, vector<12x256xf32> -> vector<12x256xf32>
    %66 = arith.addf %60, %65 : vector<12x256xf32>
    %c0_39 = arith.constant 0 : index
    %c32 = arith.constant 32 : index
    %67 = vector.load %arg11[%c0_39, %c32] : memref<12x290xbf16, #tpu.memory_space<vmem>>, vector<4x256xbf16>
    %68 = arith.mulf %67, %28 : vector<4x256xbf16>
    %c6 = arith.constant 6 : index
    %c0_40 = arith.constant 0 : index
    %c0_41 = arith.constant 0 : index
    %69 = vector.load %arg2[%c6, %c0_40, %c0_41] : memref<9x12x4xbf16, #tpu.memory_space<vmem>>, vector<1x12x4xbf16>
    %70 = vector.shape_cast %69 : vector<1x12x4xbf16> to vector<12x4xbf16>
    %cst_42 = arith.constant dense<0.000000e+00> : vector<12x256xf32>
    %71 = tpu.matmul %70, %68, %cst_42 {dimension_numbers = #tpu.dot_dimension_numbers<[1], [0], [0], [1], [0, 0, 1, 1], [], []>} : vector<12x4xbf16>, vector<4x256xbf16>, vector<12x256xf32> -> vector<12x256xf32>
    %72 = arith.addf %66, %71 : vector<12x256xf32>
    %c0_43 = arith.constant 0 : index
    %c33 = arith.constant 33 : index
    %73 = vector.load %arg11[%c0_43, %c33] : memref<12x290xbf16, #tpu.memory_space<vmem>>, vector<4x256xbf16>
    %c7 = arith.constant 7 : index
    %c0_44 = arith.constant 0 : index
    %c0_45 = arith.constant 0 : index
    %74 = vector.load %arg2[%c7, %c0_44, %c0_45] : memref<9x12x4xbf16, #tpu.memory_space<vmem>>, vector<1x12x4xbf16>
    %75 = vector.shape_cast %74 : vector<1x12x4xbf16> to vector<12x4xbf16>
    %cst_46 = arith.constant dense<0.000000e+00> : vector<12x256xf32>
    %76 = tpu.matmul %75, %73, %cst_46 {dimension_numbers = #tpu.dot_dimension_numbers<[1], [0], [0], [1], [0, 0, 1, 1], [], []>} : vector<12x4xbf16>, vector<4x256xbf16>, vector<12x256xf32> -> vector<12x256xf32>
    %77 = arith.addf %72, %76 : vector<12x256xf32>
    %c0_47 = arith.constant 0 : index
    %c34 = arith.constant 34 : index
    %78 = vector.load %arg11[%c0_47, %c34] : memref<12x290xbf16, #tpu.memory_space<vmem>>, vector<4x256xbf16>
    %79 = arith.mulf %78, %33 : vector<4x256xbf16>
    %c8 = arith.constant 8 : index
    %c0_48 = arith.constant 0 : index
    %c0_49 = arith.constant 0 : index
    %80 = vector.load %arg2[%c8, %c0_48, %c0_49] : memref<9x12x4xbf16, #tpu.memory_space<vmem>>, vector<1x12x4xbf16>
    %81 = vector.shape_cast %80 : vector<1x12x4xbf16> to vector<12x4xbf16>
    %cst_50 = arith.constant dense<0.000000e+00> : vector<12x256xf32>
    %82 = tpu.matmul %81, %79, %cst_50 {dimension_numbers = #tpu.dot_dimension_numbers<[1], [0], [0], [1], [0, 0, 1, 1], [], []>} : vector<12x4xbf16>, vector<4x256xbf16>, vector<12x256xf32> -> vector<12x256xf32>
    %83 = arith.addf %77, %82 : vector<12x256xf32>
    %cst_51 = arith.constant dense<0.000000e+00> : vector<12xf32>
    %84 = vector.multi_reduction <add>, %83, %cst_51 [1] : vector<12x256xf32> to vector<12xf32>
    %85 = vector.shape_cast %84 : vector<12xf32> to vector<12x1xf32>
    %cst_52 = arith.constant 3.906250e-03 : f32
    %86 = vector.broadcast %cst_52 : f32 to vector<12x1xf32>
    %87 = arith.mulf %85, %86 : vector<12x1xf32>
    %88 = vector.broadcast %87 : vector<12x1xf32> to vector<12x256xf32>
    %89 = arith.subf %83, %88 : vector<12x256xf32>
    %90 = arith.mulf %89, %89 : vector<12x256xf32>
    %cst_53 = arith.constant dense<0.000000e+00> : vector<12xf32>
    %91 = vector.multi_reduction <add>, %90, %cst_53 [1] : vector<12x256xf32> to vector<12xf32>
    %92 = vector.shape_cast %91 : vector<12xf32> to vector<12x1xf32>
    %cst_54 = arith.constant 3.906250e-03 : f32
    %93 = vector.broadcast %cst_54 : f32 to vector<12x1xf32>
    %94 = arith.mulf %92, %93 : vector<12x1xf32>
    %c0_55 = arith.constant 0 : index
    %c0_56 = arith.constant 0 : index
    %95 = vector.load %arg3[%c0_55, %c0_56] : memref<12x1xf32, #tpu.memory_space<vmem>>, vector<12x1xf32>
    %c0_57 = arith.constant 0 : index
    %c0_58 = arith.constant 0 : index
    %96 = vector.load %arg4[%c0_57, %c0_58] : memref<12x1xf32, #tpu.memory_space<vmem>>, vector<12x1xf32>
    %97 = arith.mulf %96, %94 : vector<12x1xf32>
    %cst_59 = arith.constant 9.99999974E-6 : f32
    %98 = vector.broadcast %cst_59 : f32 to vector<12x1xf32>
    %99 = arith.addf %97, %98 : vector<12x1xf32>
    %100 = math.rsqrt %99 : vector<12x1xf32>
    %101 = arith.mulf %95, %100 : vector<12x1xf32>
    %102 = vector.broadcast %101 : vector<12x1xf32> to vector<12x256xf32>
    %103 = arith.mulf %89, %102 : vector<12x256xf32>
    %c0_60 = arith.constant 0 : index
    %c0_61 = arith.constant 0 : index
    %104 = vector.load %arg5[%c0_60, %c0_61] : memref<12x1xf32, #tpu.memory_space<vmem>>, vector<12x1xf32>
    %105 = vector.broadcast %104 : vector<12x1xf32> to vector<12x256xf32>
    %106 = arith.addf %103, %105 : vector<12x256xf32>
    %cst_62 = arith.constant 0.000000e+00 : f32
    %107 = vector.broadcast %cst_62 : f32 to vector<12x256xf32>
    %108 = arith.cmpf oge, %106, %107 : vector<12x256xf32>
    %cst_63 = arith.constant 0.00999999977 : f32
    %109 = vector.broadcast %cst_63 : f32 to vector<12x256xf32>
    %110 = arith.mulf %109, %106 : vector<12x256xf32>
    %111 = arith.select %108, %106, %110 : vector<12x256xi1>, vector<12x256xf32>
    %112 = arith.truncf %111 : vector<12x256xf32> to vector<12x256xbf16>
    %c0_64 = arith.constant 0 : index
    %c17_65 = arith.constant 17 : index
    %113 = vector.load %arg11[%c0_64, %c17_65] : memref<12x290xbf16, #tpu.memory_space<vmem>>, vector<12x256xbf16>
    tpu.vector_store %arg11[%c0_64, %c17_65], %112 {strides = array<i32>} : memref<12x290xbf16, #tpu.memory_space<vmem>>, vector<12x256xbf16>,
    %114 = tpu.iota {dimensions = array<i32: 1>} : vector<12x256xi32>
    %c16_i32_66 = arith.constant 16 : i32
    %c0_i32_67 = arith.constant 0 : i32
    %115 = arith.cmpi eq, %c16_i32_66, %c0_i32_67 : i32
    %c1_i32_68 = arith.constant 1 : i32
    %116 = arith.select %115, %c1_i32_68, %c16_i32_66 : i32
    %117 = vector.broadcast %116 : i32 to vector<12x256xi32>
    %118 = arith.remsi %114, %117 : vector<12x256xi32>
    %c0_i32_69 = arith.constant 0 : i32
    %119 = vector.broadcast %c0_i32_69 : i32 to vector<12x256xi32>
    %120 = arith.cmpi ne, %118, %119 : vector<12x256xi32>
    %c0_i32_70 = arith.constant 0 : i32
    %121 = vector.broadcast %c0_i32_70 : i32 to vector<12x256xi32>
    %122 = arith.cmpi slt, %118, %121 : vector<12x256xi32>
    %c0_i32_71 = arith.constant 0 : i32
    %123 = arith.cmpi slt, %116, %c0_i32_71 : i32
    %124 = vector.broadcast %123 : i1 to vector<12x256xi1>
    %125 = vector.broadcast %124 : vector<12x256xi1> to vector<12x256xi1>
    %126 = arith.xori %122, %125 : vector<12x256xi1>
    %127 = arith.andi %126, %120 : vector<12x256xi1>
    %128 = vector.broadcast %116 : i32 to vector<12x256xi32>
    %129 = arith.addi %118, %128 : vector<12x256xi32>
    %130 = arith.select %127, %129, %118 : vector<12x256xi1>, vector<12x256xi32>
    %c1_i32_72 = arith.constant 1 : i32
    %131 = vector.broadcast %c1_i32_72 : i32 to vector<12x256xi32>
    %132 = arith.cmpi sge, %130, %131 : vector<12x256xi32>
    %133 = arith.extui %132 : vector<12x256xi1> to vector<12x256xi32>
    %134 = arith.sitofp %133 : vector<12x256xi32> to vector<12x256xf32>
    %135 = arith.truncf %134 : vector<12x256xf32> to vector<12x256xbf16>
    %c14_i32_73 = arith.constant 14 : i32
    %136 = vector.broadcast %c14_i32_73 : i32 to vector<12x256xi32>
    %137 = arith.cmpi sle, %130, %136 : vector<12x256xi32>
    %138 = arith.extui %137 : vector<12x256xi1> to vector<12x256xi32>
    %139 = arith.sitofp %138 : vector<12x256xi32> to vector<12x256xf32>
    %140 = arith.truncf %139 : vector<12x256xf32> to vector<12x256xbf16>
    %c0_74 = arith.constant 0 : index
    %c0_75 = arith.constant 0 : index
    %141 = vector.load %arg11[%c0_74, %c0_75] : memref<12x290xbf16, #tpu.memory_space<vmem>>, vector<12x256xbf16>
    %142 = arith.mulf %141, %135 : vector<12x256xbf16>
    %c0_76 = arith.constant 0 : index
    %c0_77 = arith.constant 0 : index
    %c0_78 = arith.constant 0 : index
    %143 = vector.load %arg6[%c0_76, %c0_77, %c0_78] : memref<9x12x12xbf16, #tpu.memory_space<vmem>>, vector<1x12x12xbf16>
    %144 = vector.shape_cast %143 : vector<1x12x12xbf16> to vector<12x12xbf16>
    %cst_79 = arith.constant dense<0.000000e+00> : vector<12x256xf32>
    %145 = tpu.matmul %144, %142, %cst_79 {dimension_numbers = #tpu.dot_dimension_numbers<[1], [0], [0], [1], [0, 0, 1, 1], [], []>} : vector<12x12xbf16>, vector<12x256xbf16>, vector<12x256xf32> -> vector<12x256xf32>
    %c0_80 = arith.constant 0 : index
    %c1_81 = arith.constant 1 : index
    %146 = vector.load %arg11[%c0_80, %c1_81] : memref<12x290xbf16, #tpu.memory_space<vmem>>, vector<12x256xbf16>
    %c1_82 = arith.constant 1 : index
    %c0_83 = arith.constant 0 : index
    %c0_84 = arith.constant 0 : index
    %147 = vector.load %arg6[%c1_82, %c0_83, %c0_84] : memref<9x12x12xbf16, #tpu.memory_space<vmem>>, vector<1x12x12xbf16>
    %148 = vector.shape_cast %147 : vector<1x12x12xbf16> to vector<12x12xbf16>
    %cst_85 = arith.constant dense<0.000000e+00> : vector<12x256xf32>
    %149 = tpu.matmul %148, %146, %cst_85 {dimension_numbers = #tpu.dot_dimension_numbers<[1], [0], [0], [1], [0, 0, 1, 1], [], []>} : vector<12x12xbf16>, vector<12x256xbf16>, vector<12x256xf32> -> vector<12x256xf32>
    %150 = arith.addf %145, %149 : vector<12x256xf32>
    %c0_86 = arith.constant 0 : index
    %c2_87 = arith.constant 2 : index
    %151 = vector.load %arg11[%c0_86, %c2_87] : memref<12x290xbf16, #tpu.memory_space<vmem>>, vector<12x256xbf16>
    %152 = arith.mulf %151, %140 : vector<12x256xbf16>
    %c2_88 = arith.constant 2 : index
    %c0_89 = arith.constant 0 : index
    %c0_90 = arith.constant 0 : index
    %153 = vector.load %arg6[%c2_88, %c0_89, %c0_90] : memref<9x12x12xbf16, #tpu.memory_space<vmem>>, vector<1x12x12xbf16>
    %154 = vector.shape_cast %153 : vector<1x12x12xbf16> to vector<12x12xbf16>
    %cst_91 = arith.constant dense<0.000000e+00> : vector<12x256xf32>
    %155 = tpu.matmul %154, %152, %cst_91 {dimension_numbers = #tpu.dot_dimension_numbers<[1], [0], [0], [1], [0, 0, 1, 1], [], []>} : vector<12x12xbf16>, vector<12x256xbf16>, vector<12x256xf32> -> vector<12x256xf32>
    %156 = arith.addf %150, %155 : vector<12x256xf32>
    %c0_92 = arith.constant 0 : index
    %c16_93 = arith.constant 16 : index
    %157 = vector.load %arg11[%c0_92, %c16_93] : memref<12x290xbf16, #tpu.memory_space<vmem>>, vector<12x256xbf16>
    %158 = arith.mulf %157, %135 : vector<12x256xbf16>
    %c3_94 = arith.constant 3 : index
    %c0_95 = arith.constant 0 : index
    %c0_96 = arith.constant 0 : index
    %159 = vector.load %arg6[%c3_94, %c0_95, %c0_96] : memref<9x12x12xbf16, #tpu.memory_space<vmem>>, vector<1x12x12xbf16>
    %160 = vector.shape_cast %159 : vector<1x12x12xbf16> to vector<12x12xbf16>
    %cst_97 = arith.constant dense<0.000000e+00> : vector<12x256xf32>
    %161 = tpu.matmul %160, %158, %cst_97 {dimension_numbers = #tpu.dot_dimension_numbers<[1], [0], [0], [1], [0, 0, 1, 1], [], []>} : vector<12x12xbf16>, vector<12x256xbf16>, vector<12x256xf32> -> vector<12x256xf32>
    %162 = arith.addf %156, %161 : vector<12x256xf32>
    %c0_98 = arith.constant 0 : index
    %c17_99 = arith.constant 17 : index
    %163 = vector.load %arg11[%c0_98, %c17_99] : memref<12x290xbf16, #tpu.memory_space<vmem>>, vector<12x256xbf16>
    %c4_100 = arith.constant 4 : index
    %c0_101 = arith.constant 0 : index
    %c0_102 = arith.constant 0 : index
    %164 = vector.load %arg6[%c4_100, %c0_101, %c0_102] : memref<9x12x12xbf16, #tpu.memory_space<vmem>>, vector<1x12x12xbf16>
    %165 = vector.shape_cast %164 : vector<1x12x12xbf16> to vector<12x12xbf16>
    %cst_103 = arith.constant dense<0.000000e+00> : vector<12x256xf32>
    %166 = tpu.matmul %165, %163, %cst_103 {dimension_numbers = #tpu.dot_dimension_numbers<[1], [0], [0], [1], [0, 0, 1, 1], [], []>} : vector<12x12xbf16>, vector<12x256xbf16>, vector<12x256xf32> -> vector<12x256xf32>
    %167 = arith.addf %162, %166 : vector<12x256xf32>
    %c0_104 = arith.constant 0 : index
    %c18_105 = arith.constant 18 : index
    %168 = vector.load %arg11[%c0_104, %c18_105] : memref<12x290xbf16, #tpu.memory_space<vmem>>, vector<12x256xbf16>
    %169 = arith.mulf %168, %140 : vector<12x256xbf16>
    %c5_106 = arith.constant 5 : index
    %c0_107 = arith.constant 0 : index
    %c0_108 = arith.constant 0 : index
    %170 = vector.load %arg6[%c5_106, %c0_107, %c0_108] : memref<9x12x12xbf16, #tpu.memory_space<vmem>>, vector<1x12x12xbf16>
    %171 = vector.shape_cast %170 : vector<1x12x12xbf16> to vector<12x12xbf16>
    %cst_109 = arith.constant dense<0.000000e+00> : vector<12x256xf32>
    %172 = tpu.matmul %171, %169, %cst_109 {dimension_numbers = #tpu.dot_dimension_numbers<[1], [0], [0], [1], [0, 0, 1, 1], [], []>} : vector<12x12xbf16>, vector<12x256xbf16>, vector<12x256xf32> -> vector<12x256xf32>
    %173 = arith.addf %167, %172 : vector<12x256xf32>
    %c0_110 = arith.constant 0 : index
    %c32_111 = arith.constant 32 : index
    %174 = vector.load %arg11[%c0_110, %c32_111] : memref<12x290xbf16, #tpu.memory_space<vmem>>, vector<12x256xbf16>
    %175 = arith.mulf %174, %135 : vector<12x256xbf16>
    %c6_112 = arith.constant 6 : index
    %c0_113 = arith.constant 0 : index
    %c0_114 = arith.constant 0 : index
    %176 = vector.load %arg6[%c6_112, %c0_113, %c0_114] : memref<9x12x12xbf16, #tpu.memory_space<vmem>>, vector<1x12x12xbf16>
    %177 = vector.shape_cast %176 : vector<1x12x12xbf16> to vector<12x12xbf16>
    %cst_115 = arith.constant dense<0.000000e+00> : vector<12x256xf32>
    %178 = tpu.matmul %177, %175, %cst_115 {dimension_numbers = #tpu.dot_dimension_numbers<[1], [0], [0], [1], [0, 0, 1, 1], [], []>} : vector<12x12xbf16>, vector<12x256xbf16>, vector<12x256xf32> -> vector<12x256xf32>
    %179 = arith.addf %173, %178 : vector<12x256xf32>
    %c0_116 = arith.constant 0 : index
    %c33_117 = arith.constant 33 : index
    %180 = vector.load %arg11[%c0_116, %c33_117] : memref<12x290xbf16, #tpu.memory_space<vmem>>, vector<12x256xbf16>
    %c7_118 = arith.constant 7 : index
    %c0_119 = arith.constant 0 : index
    %c0_120 = arith.constant 0 : index
    %181 = vector.load %arg6[%c7_118, %c0_119, %c0_120] : memref<9x12x12xbf16, #tpu.memory_space<vmem>>, vector<1x12x12xbf16>
    %182 = vector.shape_cast %181 : vector<1x12x12xbf16> to vector<12x12xbf16>
    %cst_121 = arith.constant dense<0.000000e+00> : vector<12x256xf32>
    %183 = tpu.matmul %182, %180, %cst_121 {dimension_numbers = #tpu.dot_dimension_numbers<[1], [0], [0], [1], [0, 0, 1, 1], [], []>} : vector<12x12xbf16>, vector<12x256xbf16>, vector<12x256xf32> -> vector<12x256xf32>
    %184 = arith.addf %179, %183 : vector<12x256xf32>
    %c0_122 = arith.constant 0 : index
    %c34_123 = arith.constant 34 : index
    %185 = vector.load %arg11[%c0_122, %c34_123] : memref<12x290xbf16, #tpu.memory_space<vmem>>, vector<12x256xbf16>
    %186 = arith.mulf %185, %140 : vector<12x256xbf16>
    %c8_124 = arith.constant 8 : index
    %c0_125 = arith.constant 0 : index
    %c0_126 = arith.constant 0 : index
    %187 = vector.load %arg6[%c8_124, %c0_125, %c0_126] : memref<9x12x12xbf16, #tpu.memory_space<vmem>>, vector<1x12x12xbf16>
    %188 = vector.shape_cast %187 : vector<1x12x12xbf16> to vector<12x12xbf16>
    %cst_127 = arith.constant dense<0.000000e+00> : vector<12x256xf32>
    %189 = tpu.matmul %188, %186, %cst_127 {dimension_numbers = #tpu.dot_dimension_numbers<[1], [0], [0], [1], [0, 0, 1, 1], [], []>} : vector<12x12xbf16>, vector<12x256xbf16>, vector<12x256xf32> -> vector<12x256xf32>
    %190 = arith.addf %184, %189 : vector<12x256xf32>
    %cst_128 = arith.constant dense<0.000000e+00> : vector<12xf32>
    %191 = vector.multi_reduction <add>, %190, %cst_128 [1] : vector<12x256xf32> to vector<12xf32>
    %192 = vector.shape_cast %191 : vector<12xf32> to vector<12x1xf32>
    %cst_129 = arith.constant 3.906250e-03 : f32
    %193 = vector.broadcast %cst_129 : f32 to vector<12x1xf32>
    %194 = arith.mulf %192, %193 : vector<12x1xf32>
    %195 = vector.broadcast %194 : vector<12x1xf32> to vector<12x256xf32>
    %196 = arith.subf %190, %195 : vector<12x256xf32>
    %197 = arith.mulf %196, %196 : vector<12x256xf32>
    %cst_130 = arith.constant dense<0.000000e+00> : vector<12xf32>
    %198 = vector.multi_reduction <add>, %197, %cst_130 [1] : vector<12x256xf32> to vector<12xf32>
    %199 = vector.shape_cast %198 : vector<12xf32> to vector<12x1xf32>
    %cst_131 = arith.constant 3.906250e-03 : f32
    %200 = vector.broadcast %cst_131 : f32 to vector<12x1xf32>
    %201 = arith.mulf %199, %200 : vector<12x1xf32>
    %c0_132 = arith.constant 0 : index
    %c0_133 = arith.constant 0 : index
    %202 = vector.load %arg7[%c0_132, %c0_133] : memref<12x1xf32, #tpu.memory_space<vmem>>, vector<12x1xf32>
    %c0_134 = arith.constant 0 : index
    %c0_135 = arith.constant 0 : index
    %203 = vector.load %arg8[%c0_134, %c0_135] : memref<12x1xf32, #tpu.memory_space<vmem>>, vector<12x1xf32>
    %204 = arith.mulf %203, %201 : vector<12x1xf32>
    %cst_136 = arith.constant 9.99999974E-6 : f32
    %205 = vector.broadcast %cst_136 : f32 to vector<12x1xf32>
    %206 = arith.addf %204, %205 : vector<12x1xf32>
    %207 = math.rsqrt %206 : vector<12x1xf32>
    %208 = arith.mulf %202, %207 : vector<12x1xf32>
    %209 = vector.broadcast %208 : vector<12x1xf32> to vector<12x256xf32>
    %210 = arith.mulf %196, %209 : vector<12x256xf32>
    %c0_137 = arith.constant 0 : index
    %c0_138 = arith.constant 0 : index
    %211 = vector.load %arg9[%c0_137, %c0_138] : memref<12x1xf32, #tpu.memory_space<vmem>>, vector<12x1xf32>
    %212 = vector.broadcast %211 : vector<12x1xf32> to vector<12x256xf32>
    %213 = arith.addf %210, %212 : vector<12x256xf32>
    %cst_139 = arith.constant 0.000000e+00 : f32
    %214 = vector.broadcast %cst_139 : f32 to vector<12x256xf32>
    %215 = arith.cmpf oge, %213, %214 : vector<12x256xf32>
    %cst_140 = arith.constant 0.00999999977 : f32
    %216 = vector.broadcast %cst_140 : f32 to vector<12x256xf32>
    %217 = arith.mulf %216, %213 : vector<12x256xf32>
    %218 = arith.select %215, %213, %217 : vector<12x256xi1>, vector<12x256xf32>
    %219 = vector.shape_cast %218 : vector<12x256xf32> to vector<1x12x256xf32>
    %c0_141 = arith.constant 0 : index
    %c0_142 = arith.constant 0 : index
    %c0_143 = arith.constant 0 : index
    %220 = vector.load %arg10[%c0_141, %c0_142, %c0_143] : memref<1x12x256xf32, #tpu.memory_space<vmem>>, vector<1x12x256xf32>
    tpu.vector_store %arg10[%c0_141, %c0_142, %c0_143], %219 {strides = array<i32>} : memref<1x12x256xf32, #tpu.memory_space<vmem>>, vector<1x12x256xf32>,
    return
  }
  func.func @transform_0(%arg0: i32) -> (i32, i32, i32) {
    %c0_i32 = arith.constant 0 : i32
    %c0_i32_0 = arith.constant 0 : i32
    %c0_i32_1 = arith.constant 0 : i32
    return %arg0, %c0_i32, %c0_i32_0 : i32, i32, i32
  }
  func.func @transform_1(%arg0: i32) -> (i32, i32, i32) {
    %c0_i32 = arith.constant 0 : i32
    %c0_i32_0 = arith.constant 0 : i32
    %c0_i32_1 = arith.constant 0 : i32
    %c0_i32_2 = arith.constant 0 : i32
    return %c0_i32, %c0_i32_0, %c0_i32_1 : i32, i32, i32
  }
  func.func @transform_2(%arg0: i32) -> (i32, i32) {
    %c0_i32 = arith.constant 0 : i32
    %c0_i32_0 = arith.constant 0 : i32
    %c0_i32_1 = arith.constant 0 : i32
    return %c0_i32, %c0_i32_0 : i32, i32
  }
  func.func @transform_3(%arg0: i32) -> (i32, i32) {
    %c0_i32 = arith.constant 0 : i32
    %c0_i32_0 = arith.constant 0 : i32
    %c0_i32_1 = arith.constant 0 : i32
    return %c0_i32, %c0_i32_0 : i32, i32
  }
  func.func @transform_4(%arg0: i32) -> (i32, i32) {
    %c0_i32 = arith.constant 0 : i32
    %c0_i32_0 = arith.constant 0 : i32
    %c0_i32_1 = arith.constant 0 : i32
    return %c0_i32, %c0_i32_0 : i32, i32
  }
  func.func @transform_5(%arg0: i32) -> (i32, i32, i32) {
    %c0_i32 = arith.constant 0 : i32
    %c0_i32_0 = arith.constant 0 : i32
    %c0_i32_1 = arith.constant 0 : i32
    %c0_i32_2 = arith.constant 0 : i32
    return %c0_i32, %c0_i32_0, %c0_i32_1 : i32, i32, i32
  }
  func.func @transform_6(%arg0: i32) -> (i32, i32) {
    %c0_i32 = arith.constant 0 : i32
    %c0_i32_0 = arith.constant 0 : i32
    %c0_i32_1 = arith.constant 0 : i32
    return %c0_i32, %c0_i32_0 : i32, i32
  }
  func.func @transform_7(%arg0: i32) -> (i32, i32) {
    %c0_i32 = arith.constant 0 : i32
    %c0_i32_0 = arith.constant 0 : i32
    %c0_i32_1 = arith.constant 0 : i32
    return %c0_i32, %c0_i32_0 : i32, i32
  }
  func.func @transform_8(%arg0: i32) -> (i32, i32) {
    %c0_i32 = arith.constant 0 : i32
    %c0_i32_0 = arith.constant 0 : i32
    %c0_i32_1 = arith.constant 0 : i32
    return %c0_i32, %c0_i32_0 : i32, i32
  }
  func.func @transform_9(%arg0: i32) -> (i32, i32, i32) {
    %c0_i32 = arith.constant 0 : i32
    %c0_i32_0 = arith.constant 0 : i32
    %c0_i32_1 = arith.constant 0 : i32
    return %arg0, %c0_i32, %c0_i32_0 : i32, i32, i32
  }
}

</mosaic_0001>

<llo_original>
// kernel: tpu_custom_call.1
$region0: #{tpu_custom_call.1}
  #allocation0 [shape = 'u32[]', space=smem, size = 0x4, offset = 0x4, fixed_abs, tag = 'smem constant byte address 0x4 - core index']
  #allocation1 [shape = 'u32[144,128]{1,0:T(1,128)}', space=vmem, size = 0x12000, scoped, tag = 'internal scratch']
  #allocation2 [shape = 'bf16[12,290]{1,0:T(8,128)(2,1)}', space=vmem, size = 0x3000, scoped, tag = 'scratch operand']
  %s0 = inlined_call_operand.vmem [shape: f32[2,4,256], index: 0, kind: input, shape index: {}]
  %s1 = inlined_call_operand.vmem [shape: bf16[9,12,4], index: 1, kind: input, shape index: {}]
  %s2 = inlined_call_operand.vmem [shape: f32[12,1], index: 2, kind: input, shape index: {}]
  %s3 = inlined_call_operand.vmem [shape: f32[12,1], index: 3, kind: input, shape index: {}]
  %s4 = inlined_call_operand.vmem [shape: f32[12,1], index: 4, kind: input, shape index: {}]
  %s5 = inlined_call_operand.vmem [shape: bf16[9,12,12], index: 5, kind: input, shape index: {}]
  %s6 = inlined_call_operand.vmem [shape: f32[12,1], index: 6, kind: input, shape index: {}]
  %s7 = inlined_call_operand.vmem [shape: f32[12,1], index: 7, kind: input, shape index: {}]
  %s8 = inlined_call_operand.vmem [shape: f32[12,1], index: 8, kind: input, shape index: {}]
  %s9 = inlined_call_operand.vmem [shape: f32[2,12,256], index: 9, kind: output, shape index: {}]
  %s10 = sld [smem:[#allocation0]]
  $region69: #{tpu_custom_call.1} parent=0
    _
  %s12 = ssub.s32 1, %s10
  %s13 = scalar_select 0, %s12, %s10
  loop: start=0, step=1, limit=4
  $region2: #{tpu_custom_call.1} parent=0 // loop_pre_header
    _
  $region3: #{tpu_custom_call.1} parent=0 // loop_header
    %s15 = sphi 0, %s19
    %p16 = scmp.ge.s32.totalorder %s15, 4
    %s25 = sphi 0, %s27
    %s28 = sphi 0, %s25
    %s29 = sphi 0, %s28
    %s45 = sphi 0, %s29
    %s49 = sphi 0, %s49
    %s51 = sphi 0, %s49
    %s52 = sphi 0, %s51
    %s66 = sphi 0, %s52
    %s70 = sphi 0, %s70
    %s72 = sphi 0, %s70
    %s73 = sphi 0, %s72
    %s87 = sphi 0, %s73
    %s91 = sphi 0, %s91
    %s93 = sphi 0, %s91
    %s94 = sphi 0, %s93
    %s108 = sphi 0, %s94
    %s112 = sphi 0, %s112
    %s114 = sphi 0, %s112
    %s115 = sphi 0, %s114
    %s129 = sphi 0, %s115
    %s133 = sphi 0, %s133
    %s135 = sphi 0, %s133
    %s136 = sphi 0, %s135
    %s150 = sphi 0, %s136
    %s154 = sphi 0, %s154
    %s156 = sphi 0, %s154
    %s157 = sphi 0, %s156
    %s171 = sphi 0, %s157
    %s175 = sphi 0, %s175
    %s177 = sphi 0, %s175
    %s178 = sphi 0, %s177
    %s192 = sphi 0, %s178
    %s196 = sphi 0, %s196
    %s198 = sphi 0, %s196
    %s199 = sphi 0, %s198
    %s213 = sphi 0, %s199
    %s219 = sphi 0, %s221
    %s222 = sphi 0, %s219
    %s223 = sphi 0, %s222
    %s239 = sphi 0, %s223
  $region4: #{tpu_custom_call.1} parent=0 // loop_header_branch
    %18 = sbr.rel (%p16) target = $region8
  $region5: #{tpu_custom_call.1} parent=0 // loop_body
    %s20 = ssub.s32 %s15, 1
    %s21 = ssub.s32 %s15, 2
    %s22 = sadd.s32 %s15, 1
    %s23 = ssub.s32 %s15, %s22
    %p24 = scmp.eq.s32.totalorder %s23, 0
    %s26 = sadd.s32 %s25, 1
    %s27 = scalar_select %p24, %s25, %s26
    %p30 = pneg %p24
    %p31 = scmp.eq.s32.totalorder %s15, 1
    %p32 = por %p30, %p31
    %p33 = scmp.ne.s32.totalorder %s25, %s28
    %p34 = scmp.eq.s32.totalorder %s15, 0
    %p35 = por %p33, %p34
    %p36 = scmp.ne.s32.totalorder %s25, %s28
    %p37 = scmp.eq.s32.totalorder %s20, 1
    %p38 = por %p36, %p37
    %p39 = scmp.ne.s32.totalorder %s28, %s29
    %p40 = scmp.eq.s32.totalorder %s20, 0
    %p41 = por %p39, %p40
    %p42 = scmp.ne.s32.totalorder %s28, %s29
    %p43 = scmp.eq.s32.totalorder %s21, 1
    %p44 = por %p42, %p43
    %p46 = scmp.ne.s32.totalorder %s29, %s45
    %p47 = scmp.eq.s32.totalorder %s21, 0
    %p48 = por %p46, %p47
    %s50 = sadd.s32 %s49, 1
    %p53 = scmp.eq.s32.totalorder %s15, 1
    %p54 = scmp.ne.s32.totalorder %s49, %s51
    %p55 = scmp.eq.s32.totalorder %s15, 0
    %p56 = por %p54, %p55
    %p57 = scmp.ne.s32.totalorder %s49, %s51
    %p58 = scmp.eq.s32.totalorder %s20, 1
    %p59 = por %p57, %p58
    %p60 = scmp.ne.s32.totalorder %s51, %s52
    %p61 = scmp.eq.s32.totalorder %s20, 0
    %p62 = por %p60, %p61
    %p63 = scmp.ne.s32.totalorder %s51, %s52
    %p64 = scmp.eq.s32.totalorder %s21, 1
    %p65 = por %p63, %p64
    %p67 = scmp.ne.s32.totalorder %s52, %s66
    %p68 = scmp.eq.s32.totalorder %s21, 0
    %p69 = por %p67, %p68
    %s71 = sadd.s32 %s70, 1
    %p74 = scmp.eq.s32.totalorder %s15, 1
    %p75 = scmp.ne.s32.totalorder %s70, %s72
    %p76 = scmp.eq.s32.totalorder %s15, 0
    %p77 = por %p75, %p76
    %p78 = scmp.ne.s32.totalorder %s70, %s72
    %p79 = scmp.eq.s32.totalorder %s20, 1
    %p80 = por %p78, %p79
    %p81 = scmp.ne.s32.totalorder %s72, %s73
    %p82 = scmp.eq.s32.totalorder %s20, 0
    %p83 = por %p81, %p82
    %p84 = scmp.ne.s32.totalorder %s72, %s73
    %p85 = scmp.eq.s32.totalorder %s21, 1
    %p86 = por %p84, %p85
    %p88 = scmp.ne.s32.totalorder %s73, %s87
    %p89 = scmp.eq.s32.totalorder %s21, 0
    %p90 = por %p88, %p89
    %s92 = sadd.s32 %s91, 1
    %p95 = scmp.eq.s32.totalorder %s15, 1
    %p96 = scmp.ne.s32.totalorder %s91, %s93
    %p97 = scmp.eq.s32.totalorder %s15, 0
    %p98 = por %p96, %p97
    %p99 = scmp.ne.s32.totalorder %s91, %s93
    %p100 = scmp.eq.s32.totalorder %s20, 1
    %p101 = por %p99, %p100
    %p102 = scmp.ne.s32.totalorder %s93, %s94
    %p103 = scmp.eq.s32.totalorder %s20, 0
    %p104 = por %p102, %p103
    %p105 = scmp.ne.s32.totalorder %s93, %s94
    %p106 = scmp.eq.s32.totalorder %s21, 1
    %p107 = por %p105, %p106
    %p109 = scmp.ne.s32.totalorder %s94, %s108
    %p110 = scmp.eq.s32.totalorder %s21, 0
    %p111 = por %p109, %p110
    %s113 = sadd.s32 %s112, 1
    %p116 = scmp.eq.s32.totalorder %s15, 1
    %p117 = scmp.ne.s32.totalorder %s112, %s114
    %p118 = scmp.eq.s32.totalorder %s15, 0
    %p119 = por %p117, %p118
    %p120 = scmp.ne.s32.totalorder %s112, %s114
    %p121 = scmp.eq.s32.totalorder %s20, 1
    %p122 = por %p120, %p121
    %p123 = scmp.ne.s32.totalorder %s114, %s115
    %p124 = scmp.eq.s32.totalorder %s20, 0
    %p125 = por %p123, %p124
    %p126 = scmp.ne.s32.totalorder %s114, %s115
    %p127 = scmp.eq.s32.totalorder %s21, 1
    %p128 = por %p126, %p127
    %p130 = scmp.ne.s32.totalorder %s115, %s129
    %p131 = scmp.eq.s32.totalorder %s21, 0
    %p132 = por %p130, %p131
    %s134 = sadd.s32 %s133, 1
    %p137 = scmp.eq.s32.totalorder %s15, 1
    %p138 = scmp.ne.s32.totalorder %s133, %s135
    %p139 = scmp.eq.s32.totalorder %s15, 0
    %p140 = por %p138, %p139
    %p141 = scmp.ne.s32.totalorder %s133, %s135
    %p142 = scmp.eq.s32.totalorder %s20, 1
    %p143 = por %p141, %p142
    %p144 = scmp.ne.s32.totalorder %s135, %s136
    %p145 = scmp.eq.s32.totalorder %s20, 0
    %p146 = por %p144, %p145
    %p147 = scmp.ne.s32.totalorder %s135, %s136
    %p148 = scmp.eq.s32.totalorder %s21, 1
    %p149 = por %p147, %p148
    %p151 = scmp.ne.s32.totalorder %s136, %s150
    %p152 = scmp.eq.s32.totalorder %s21, 0
    %p153 = por %p151, %p152
    %s155 = sadd.s32 %s154, 1
    %p158 = scmp.eq.s32.totalorder %s15, 1
    %p159 = scmp.ne.s32.totalorder %s154, %s156
    %p160 = scmp.eq.s32.totalorder %s15, 0
    %p161 = por %p159, %p160
    %p162 = scmp.ne.s32.totalorder %s154, %s156
    %p163 = scmp.eq.s32.totalorder %s20, 1
    %p164 = por %p162, %p163
    %p165 = scmp.ne.s32.totalorder %s156, %s157
    %p166 = scmp.eq.s32.totalorder %s20, 0
    %p167 = por %p165, %p166
    %p168 = scmp.ne.s32.totalorder %s156, %s157
    %p169 = scmp.eq.s32.totalorder %s21, 1
    %p170 = por %p168, %p169
    %p172 = scmp.ne.s32.totalorder %s157, %s171
    %p173 = scmp.eq.s32.totalorder %s21, 0
    %p174 = por %p172, %p173
    %s176 = sadd.s32 %s175, 1
    %p179 = scmp.eq.s32.totalorder %s15, 1
    %p180 = scmp.ne.s32.totalorder %s175, %s177
    %p181 = scmp.eq.s32.totalorder %s15, 0
    %p182 = por %p180, %p181
    %p183 = scmp.ne.s32.totalorder %s175, %s177
    %p184 = scmp.eq.s32.totalorder %s20, 1
    %p185 = por %p183, %p184
    %p186 = scmp.ne.s32.totalorder %s177, %s178
    %p187 = scmp.eq.s32.totalorder %s20, 0
    %p188 = por %p186, %p187
    %p189 = scmp.ne.s32.totalorder %s177, %s178
    %p190 = scmp.eq.s32.totalorder %s21, 1
    %p191 = por %p189, %p190
    %p193 = scmp.ne.s32.totalorder %s178, %s192
    %p194 = scmp.eq.s32.totalorder %s21, 0
    %p195 = por %p193, %p194
    %s197 = sadd.s32 %s196, 1
    %p200 = scmp.eq.s32.totalorder %s15, 1
    %p201 = scmp.ne.s32.totalorder %s196, %s198
    %p202 = scmp.eq.s32.totalorder %s15, 0
    %p203 = por %p201, %p202
    %p204 = scmp.ne.s32.totalorder %s196, %s198
    %p205 = scmp.eq.s32.totalorder %s20, 1
    %p206 = por %p204, %p205
    %p207 = scmp.ne.s32.totalorder %s198, %s199
    %p208 = scmp.eq.s32.totalorder %s20, 0
    %p209 = por %p207, %p208
    %p210 = scmp.ne.s32.totalorder %s198, %s199
    %p211 = scmp.eq.s32.totalorder %s21, 1
    %p212 = por %p210, %p211
    %p214 = scmp.ne.s32.totalorder %s199, %s213
    %p215 = scmp.eq.s32.totalorder %s21, 0
    %p216 = por %p214, %p215
    %s217 = ssub.s32 %s15, %s22
    %p218 = scmp.eq.s32.totalorder %s217, 0
    %s220 = sadd.s32 %s219, 1
    %s221 = scalar_select %p218, %s219, %s220
    %p224 = pneg %p218
    %p225 = scmp.eq.s32.totalorder %s15, 1
    %p226 = por %p224, %p225
    %p227 = scmp.ne.s32.totalorder %s219, %s222
    %p228 = scmp.eq.s32.totalorder %s15, 0
    %p229 = por %p227, %p228
    %p230 = scmp.ne.s32.totalorder %s219, %s222
    %p231 = scmp.eq.s32.totalorder %s20, 1
    %p232 = por %p230, %p231
    %p233 = scmp.ne.s32.totalorder %s222, %s223
    %p234 = scmp.eq.s32.totalorder %s20, 0
    %p235 = por %p233, %p234
    %p236 = scmp.ne.s32.totalorder %s222, %s223
    %p237 = scmp.eq.s32.totalorder %s21, 1
    %p238 = por %p236, %p237
    %p240 = scmp.ne.s32.totalorder %s223, %s239
    %p241 = scmp.eq.s32.totalorder %s21, 0
    %p242 = por %p240, %p241
    %p243 = scmp.le.s32.totalorder 1, %s15
    %p244 = scmp.lt.s32.totalorder %s15, 3
    %p245 = pnand %p243, %p244
    %p246 = pneg %p245
    // Predicated region
    $region9: #{tpu_custom_call.1} parent=5 // pred_check
      _
    $region10: #{tpu_custom_call.1} parent=5 // pred_check_branch
      %248 = sbr.rel (%p245) target = $region12
    $region11: #{tpu_custom_call.1} parent=5 // pred_region
      %s249 = ssub.s32 %s15, 1
      // Predicated region
      $region13: #{tpu_custom_call.1} parent=11 // pred_check
        %p250 = pneg %p62
      $region14: #{tpu_custom_call.1} parent=11 // pred_check_branch
        %252 = sbr.rel (%p250) target = $region16
      $region15: #{tpu_custom_call.1} parent=11 // pred_region
        _
      $region16: #{tpu_custom_call.1} parent=11 // pred_fallthru
        _
      // Predicated region
      $region17: #{tpu_custom_call.1} parent=11 // pred_check
        %p253 = pneg %p83
      $region18: #{tpu_custom_call.1} parent=11 // pred_check_branch
        %255 = sbr.rel (%p253) target = $region20
      $region19: #{tpu_custom_call.1} parent=11 // pred_region
        _
      $region20: #{tpu_custom_call.1} parent=11 // pred_fallthru
        _
      // Predicated region
      $region21: #{tpu_custom_call.1} parent=11 // pred_check
        %p256 = pneg %p104
      $region22: #{tpu_custom_call.1} parent=11 // pred_check_branch
        %258 = sbr.rel (%p256) target = $region24
      $region23: #{tpu_custom_call.1} parent=11 // pred_region
        _
      $region24: #{tpu_custom_call.1} parent=11 // pred_fallthru
        _
      // Predicated region
      $region25: #{tpu_custom_call.1} parent=11 // pred_check
        %p259 = pneg %p125
      $region26: #{tpu_custom_call.1} parent=11 // pred_check_branch
        %261 = sbr.rel (%p259) target = $region28
      $region27: #{tpu_custom_call.1} parent=11 // pred_region
        _
      $region28: #{tpu_custom_call.1} parent=11 // pred_fallthru
        _
      // Predicated region
      $region29: #{tpu_custom_call.1} parent=11 // pred_check
        %p262 = pneg %p146
      $region30: #{tpu_custom_call.1} parent=11 // pred_check_branch
        %264 = sbr.rel (%p262) target = $region32
      $region31: #{tpu_custom_call.1} parent=11 // pred_region
        _
      $region32: #{tpu_custom_call.1} parent=11 // pred_fallthru
        _
      // Predicated region
      $region33: #{tpu_custom_call.1} parent=11 // pred_check
        %p265 = pneg %p167
      $region34: #{tpu_custom_call.1} parent=11 // pred_check_branch
        %267 = sbr.rel (%p265) target = $region36
      $region35: #{tpu_custom_call.1} parent=11 // pred_region
        _
      $region36: #{tpu_custom_call.1} parent=11 // pred_fallthru
        _
      // Predicated region
      $region37: #{tpu_custom_call.1} parent=11 // pred_check
        %p268 = pneg %p188
      $region38: #{tpu_custom_call.1} parent=11 // pred_check_branch
        %270 = sbr.rel (%p268) target = $region40
      $region39: #{tpu_custom_call.1} parent=11 // pred_region
        _
      $region40: #{tpu_custom_call.1} parent=11 // pred_fallthru
        _
      // Predicated region
      $region41: #{tpu_custom_call.1} parent=11 // pred_check
        %p271 = pneg %p209
      $region42: #{tpu_custom_call.1} parent=11 // pred_check_branch
        %273 = sbr.rel (%p271) target = $region44
      $region43: #{tpu_custom_call.1} parent=11 // pred_region
        _
      $region44: #{tpu_custom_call.1} parent=11 // pred_fallthru
        _
    $region12: #{tpu_custom_call.1} parent=5 // pred_fallthru
      _
    %p274 = scmp.lt.s32.totalorder %s15, 2
    // Predicated region
    $region45: #{tpu_custom_call.1} parent=5 // pred_check
      %p275 = pneg %p274
    $region46: #{tpu_custom_call.1} parent=5 // pred_check_branch
      %277 = sbr.rel (%p275) target = $region48
    $region47: #{tpu_custom_call.1} parent=5 // pred_region
      // Predicated region
      $region49: #{tpu_custom_call.1} parent=47 // pred_check
        %p278 = pneg %p35
      $region50: #{tpu_custom_call.1} parent=47 // pred_check_branch
        %280 = sbr.rel (%p278) target = $region52
      $region51: #{tpu_custom_call.1} parent=47 // pred_region
        %p281 = scmp.lt.s32.totalorder %s15, 1
        %s282 = scalar_select %p281, %s15, 1
        %s283 = smul.addr %s282, 2
        %s284 = smul.addr %s283, 4
        %s285 = scalar_lea.vmem %s0, %s284
      $region52: #{tpu_custom_call.1} parent=47 // pred_fallthru
        _
    $region48: #{tpu_custom_call.1} parent=5 // pred_fallthru
      _
    %p286 = scmp.le.s32.totalorder 1, %s15
    %p287 = scmp.lt.s32.totalorder %s15, 3
    %p288 = pnand %p286, %p287
    %p289 = pneg %p288
    // Predicated region
    $region53: #{tpu_custom_call.1} parent=5 // pred_check
      _
    $region54: #{tpu_custom_call.1} parent=5 // pred_check_branch
      %291 = sbr.rel (%p288) target = $region56
    $region55: #{tpu_custom_call.1} parent=5 // pred_region
      %s292 = ssub.s32 %s15, 1
      %p293 = scmp.lt.s32.totalorder %s20, 1
      %s294 = scalar_select %p293, %s20, 1
      %s295 = smul.addr %s294, 2
      %s296 = smul.addr %s295, 4
      %s297 = scalar_lea.vmem %s0, %s296
      %p298 = pneg %p41
      %p299 = pneg %p38
      %p300 = pneg %p62
      %p301 = pneg %p59
      %p302 = pneg %p83
      %p303 = pneg %p80
      %p304 = pneg %p104
      %p305 = pneg %p101
      %p306 = pneg %p125
      %p307 = pneg %p122
      %p308 = pneg %p146
      %p309 = pneg %p143
      %p310 = pneg %p167
      %p311 = pneg %p164
      %p312 = pneg %p188
      %p313 = pneg %p185
      %p314 = pneg %p209
      %p315 = pneg %p206
      %p316 = pneg %p235
      %p317 = pneg %p232
      %p318 = scmp.lt.s32.totalorder %s20, 1
      %s319 = scalar_select %p318, %s20, 1
      %s320 = smul.addr %s319, 4
      %s321 = smul.addr %s320, 8
      %s322 = scalar_lea.vmem %s9, %s321
      %p323 = scmp.lt.s32.totalorder %s20, 1
      %s324 = scalar_select %p323, %s20, 1
      %s325 = smul.addr %s324, 2
      %s326 = smul.addr %s325, 4
      %s327 = scalar_lea.vmem %s0, %s326
      %p328 = scmp.lt.s32.totalorder %s20, 1
      %s329 = scalar_select %p328, %s20, 1
      %s330 = smul.addr %s329, 4
      %s331 = smul.addr %s330, 8
      %s332 = scalar_lea.vmem %s9, %s331
      %vm334 = vcmask 134144
      %335 = vst.msk [vmem:[#allocation2] sm:$0xf] %vm334, 0
      %vm336 = vcmask 132096
      %337 = vst.msk [vmem:[#allocation2 + $0xc] sm:$0x3] %vm336, 0
      %vm338 = vcmask 273544
      %339 = vst.msk [vmem:[#allocation2 + $0x8] sm:$0xf] %vm338, 0
      %vm340 = vcmask 271496
      %341 = vst.msk [vmem:[#allocation2 + $0x14] sm:$0x3] %vm340, 0
      %v342 = vld [vmem:[%s327] sm:$0xff]
      %v344 = vcombine.high %v342, %v342
      %v346 = vpack.c.bf16 %v342, %v342
      %v347 = vpack.c.bf16 %v344, %v344
      %v350 = vunpack.c.l.b16 %v346
      %v351 = vunpack.c.l.b16 %v347
      %v352 = vpack.c.b16 %v351, %v350
      %353 = vrot.lane.b32.xlu0 %v352, 17
      %v354 = vpop.permute.xlu0 %353
      %v355 = vrot.slane %v354, 4
      %vm356 = vcmask 138240
      %v357 = vsel %vm356, %v355, %v354
      %vm360 = vcmask 1041544
      %vm361 = vcmask 1045508
      %vm362 = vmor %vm361, %vm360
      %363 = vst.msk [vmem:[#allocation2] sm:$0x33] %vm362, %v357
      %364 = vst.msk [vmem:[#allocation2 + $0x8] sm:$0x3] %vm336, %v355
      %v365 = vlaneseq
      %v366 = vand.u32 %v365, 127
      %v367 = vadd.s32 %v366, 128
      %vm368 = vcmp.lt.s32.totalorder %v366, 0
      %v369 = vsub.s32 0, %v366
      %v370 = vsel %vm368, %v369, %v366
      %v371 = vshrl.u32 %v370, 4
      %v372 = vand.u32 %v370, 15
      %v373 = vsub.s32 0, %v372
      %v374 = vsel %vm368, %v373, %v372
      %vm375 = vcmp.lt.s32.totalorder %v367, 0
      %v376 = vsub.s32 0, %v367
      %v377 = vsel %vm375, %v376, %v367
      %v378 = vshrl.u32 %v377, 4
      %v379 = vand.u32 %v377, 15
      %v380 = vsub.s32 0, %v379
      %v381 = vsel %vm375, %v380, %v379
      %vm382 = vcmp.ne.s32.totalorder %v374, 0
      %vm383 = vcmp.ne.s32.totalorder %v381, 0
      %vm384 = vcmp.lt.s32.totalorder %v374, 0
      %vm385 = vcmp.lt.s32.totalorder %v381, 0
      %vm386 = vmand %vm384, %vm382
      %vm387 = vmand %vm385, %vm383
      %v388 = vadd.s32 %v374, 16
      %v389 = vadd.s32 %v381, 16
      %v390 = vsel %vm386, %v388, %v374
      %v391 = vsel %vm387, %v389, %v381
      %vm392 = vcmp.ge.s32.totalorder %v390, 1
      %vm393 = vcmp.ge.s32.totalorder %v391, 1
      %v394 = vsel %vm392, 1, 0
      %v395 = vsel %vm393, 1, 0
      %v396 = vcvt.s32.f32 %v394
      %v397 = vcvt.s32.f32 %v395
      %v398 = vpack.c.bf16 %v396, %v396
      %v399 = vpack.c.bf16 %v397, %v397
      %vm400 = vcmp.le.s32.totalorder %v390, 14
      %vm401 = vcmp.le.s32.totalorder %v391, 14
      %v402 = vsel %vm400, 1, 0
      %v403 = vsel %vm401, 1, 0
      %v404 = vcvt.s32.f32 %v402
      %v405 = vcvt.s32.f32 %v403
      %v406 = vpack.c.bf16 %v404, %v404
      %v407 = vpack.c.bf16 %v405, %v405
      %v408 = vld [vmem:[#allocation2] sm:$0x33]
      %v411 = vunpack.c.l.b16 %v398
      %v412 = vunpack.c.l.b16 %v399
      %v413 = vpack.c.b16 %v412, %v411
      %v415 = vmul.bf16 %v408, %v413
      %v416 = vld [vmem:[%s1] sm:$0xf]
      %v417 = vld [vmem:[%s1 + $0x4] sm:$0x3]
      %v418 = vld [vmem:[#allocation2 + $0x8] sm:$0x3]
      %s419 = scalar_lea.vmem %s1, 8
      %v420 = vld [vmem:[%s419] sm:$0xf]
      %v421 = vld [vmem:[%s419 + $0x4] sm:$0x3]
      %v424 = vunpack.c.l.b16 %v420
      %v425 = vunpack.c.l.b16 %v421
      %v426 = vpack.c.b16 %v425, %v424
      %v429 = vunpack.c.l.b16 %v408
      %v430 = vunpack.c.h.b16 %v408
      %v431 = vunpack.c.l.b16 %v418
      %v432 = vpack.c.b16 %v429, %v429
      %v433 = vpack.c.b16 %v430, %v430
      %v434 = vpack.c.b16 %v431, %v431
      %435 = vrot.lane.b32.xlu0 %v432, 127
      %v436 = vpop.permute.xlu0 %435
      %437 = vrot.lane.b32.xlu0 %v433, 127
      %v438 = vpop.permute.xlu0 %437
      %439 = vrot.lane.b32.xlu0 %v434, 127
      %v440 = vpop.permute.xlu0 %439
      %vm441 = vcmask 1039360
      %v442 = vsel %vm441, %v436, %v438
      %v443 = vsel %vm441, %v438, %v440
      %vm444 = vcmask 31744
      %v446 = vsel %vm444, %v426, 0
      %vm448 = vcmask 1041408
      %v450 = vsel %vm448, %v442, 0
      %v453 = vsel %vm448, %v443, 0
      %455 = vmatprep.subr.bf16.mxu0 0
      %456 = vmatpush1.bf16.msra.mxu0 0
      %457 = vmatprep.subr.bf16.mxu0 0
      %458 = vmatpush1.bf16.msra.mxu0 0
      %459 = vmatprep.subr.bf16.mxu0 0
      %460 = vmatpush1.bf16.msra.mxu0 0
      %461 = vmatprep.subr.bf16.mxu0 0
      %462 = vmatpush1.bf16.msra.mxu0 0
      %463 = vmatprep.subr.bf16.mxu0 0
      %464 = vmatpush1.bf16.msra.mxu0 0
      %465 = vmatprep.subr.bf16.mxu0 0
      %466 = vmatpush1.bf16.msra.mxu0 0
      %467 = vmatprep.subr.bf16.mxu0 0
      %468 = vmatpush1.bf16.msra.mxu0 0
      %469 = vmatprep.subr.bf16.mxu0 %v453
      %470 = vmatpush1.bf16.msra.mxu0 %v450
      %471 = vmatprep.subr.bf16.mxu0 0
      %472 = vmatpush2.bf16.msra.mxu0 0
      %473 = vmatprep.subr.bf16.mxu0 0
      %474 = vmatpush2.bf16.msra.mxu0 0
      %475 = vmatprep.subr.bf16.mxu0 0
      %476 = vmatpush2.bf16.msra.mxu0 0
      %477 = vmatprep.subr.bf16.mxu0 0
      %478 = vmatpush2.bf16.msra.mxu0 0
      %479 = vmatprep.subr.bf16.mxu0 0
      %480 = vmatpush2.bf16.msra.mxu0 0
      %481 = vmatprep.subr.bf16.mxu0 0
      %482 = vmatpush2.bf16.msra.mxu0 0
      %483 = vmatprep.subr.bf16.mxu0 0
      %484 = vmatpush2.bf16.msra.mxu0 0
      %485 = vmatprep.subr.bf16.mxu0 0
      %486 = vmatpush2.bf16.msra.mxu0 0
      %487 = vmatprep.mubr.bf16.mxu0 0
      %488 = vmatmul.mubr.bf16.gmra.mxu0 %v446
      %v489 = vpop.f32.mrf.mxu0
      %v490 = vadd.f32 0.0, %v489
      %v491 = vpop.f32.mrf.mxu0
      %v492 = vadd.f32 0.0, %v491
      %v493 = vpop.f32.mrf.mxu0
      %v494 = vadd.f32 0.0, %v493
      %v495 = vpop.f32.mrf.mxu0
      %v496 = vadd.f32 0.0, %v495
      %497 = vdwg.mxu0
      %v500 = vunpack.c.l.b16 %v416
      %v501 = vunpack.c.l.b16 %v417
      %v502 = vpack.c.b16 %v501, %v500
      %v504 = vunpack.c.l.b16 %v415
      %v505 = vunpack.c.h.b16 %v415
      %v506 = vpack.c.b16 %v504, %v504
      %v507 = vpack.c.b16 %v505, %v505
      %v509 = vsel %vm444, %v502, 0
      %v512 = vsel %vm448, %v506, 0
      %v515 = vsel %vm448, %v507, 0
      %517 = vmatprep.subr.bf16.mxu0 0
      %518 = vmatpush1.bf16.msra.mxu0 0
      %519 = vmatprep.subr.bf16.mxu0 0
      %520 = vmatpush1.bf16.msra.mxu0 0
      %521 = vmatprep.subr.bf16.mxu0 0
      %522 = vmatpush1.bf16.msra.mxu0 0
      %523 = vmatprep.subr.bf16.mxu0 0
      %524 = vmatpush1.bf16.msra.mxu0 0
      %525 = vmatprep.subr.bf16.mxu0 0
      %526 = vmatpush1.bf16.msra.mxu0 0
      %527 = vmatprep.subr.bf16.mxu0 0
      %528 = vmatpush1.bf16.msra.mxu0 0
      %529 = vmatprep.subr.bf16.mxu0 0
      %530 = vmatpush1.bf16.msra.mxu0 0
      %531 = vmatprep.subr.bf16.mxu0 %v515
      %532 = vmatpush1.bf16.msra.mxu0 %v512
      %533 = vmatprep.subr.bf16.mxu0 0
      %534 = vmatpush2.bf16.msra.mxu0 0
      %535 = vmatprep.subr.bf16.mxu0 0
      %536 = vmatpush2.bf16.msra.mxu0 0
      %537 = vmatprep.subr.bf16.mxu0 0
      %538 = vmatpush2.bf16.msra.mxu0 0
      %539 = vmatprep.subr.bf16.mxu0 0
      %540 = vmatpush2.bf16.msra.mxu0 0
      %541 = vmatprep.subr.bf16.mxu0 0
      %542 = vmatpush2.bf16.msra.mxu0 0
      %543 = vmatprep.subr.bf16.mxu0 0
      %544 = vmatpush2.bf16.msra.mxu0 0
      %545 = vmatprep.subr.bf16.mxu0 0
      %546 = vmatpush2.bf16.msra.mxu0 0
      %547 = vmatprep.subr.bf16.mxu0 0
      %548 = vmatpush2.bf16.msra.mxu0 0
      %549 = vmatprep.mubr.bf16.mxu0 0
      %550 = vmatmul.mubr.bf16.gmra.mxu0 %v509
      %v551 = vpop.f32.mrf.mxu0
      %v552 = vadd.f32 %v490, %v551
      %v553 = vpop.f32.mrf.mxu0
      %v554 = vadd.f32 %v492, %v553
      %v555 = vpop.f32.mrf.mxu0
      %v556 = vadd.f32 %v494, %v555
      %v557 = vpop.f32.mrf.mxu0
      %v558 = vadd.f32 %v496, %v557
      %559 = vdwg.mxu0
      %v562 = vunpack.c.l.b16 %v406
      %v563 = vunpack.c.l.b16 %v407
      %v564 = vpack.c.b16 %v563, %v562
      %565 = vrot.lane.b32.xlu0 %v564, 2
      %v566 = vpop.permute.xlu0 %565
      %v567 = vrot.slane %v566, 4
      %vm568 = vcmask 15360
      %v569 = vsel %vm568, %v567, %v566
      %v572 = vmul.bf16 %v408, %v569
      %v573 = vmul.bf16 %v418, %v567
      %s574 = scalar_lea.vmem %s1, 16
      %v575 = vld [vmem:[%s574] sm:$0xf]
      %v576 = vld [vmem:[%s574 + $0x4] sm:$0x3]
      %v579 = vunpack.c.l.b16 %v575
      %v580 = vunpack.c.l.b16 %v576
      %v581 = vpack.c.b16 %v580, %v579
      %v584 = vunpack.c.l.b16 %v572
      %v585 = vunpack.c.h.b16 %v572
      %v586 = vunpack.c.l.b16 %v573
      %v587 = vpack.c.b16 %v584, %v584
      %v588 = vpack.c.b16 %v585, %v585
      %v589 = vpack.c.b16 %v586, %v586
      %590 = vrot.lane.b32.xlu0 %v587, 126
      %v591 = vpop.permute.xlu0 %590
      %592 = vrot.lane.b32.xlu0 %v588, 126
      %v593 = vpop.permute.xlu0 %592
      %594 = vrot.lane.b32.xlu0 %v589, 126
      %v595 = vpop.permute.xlu0 %594
      %vm596 = vcmask 1031168
      %v597 = vsel %vm596, %v591, %v593
      %v598 = vsel %vm596, %v593, %v595
      %v600 = vsel %vm444, %v581, 0
      %v603 = vsel %vm448, %v597, 0
      %v606 = vsel %vm448, %v598, 0
      %608 = vmatprep.subr.bf16.mxu0 0
      %609 = vmatpush1.bf16.msra.mxu0 0
      %610 = vmatprep.subr.bf16.mxu0 0
      %611 = vmatpush1.bf16.msra.mxu0 0
      %612 = vmatprep.subr.bf16.mxu0 0
      %613 = vmatpush1.bf16.msra.mxu0 0
      %614 = vmatprep.subr.bf16.mxu0 0
      %615 = vmatpush1.bf16.msra.mxu0 0
      %616 = vmatprep.subr.bf16.mxu0 0
      %617 = vmatpush1.bf16.msra.mxu0 0
      %618 = vmatprep.subr.bf16.mxu0 0
      %619 = vmatpush1.bf16.msra.mxu0 0
      %620 = vmatprep.subr.bf16.mxu0 0
      %621 = vmatpush1.bf16.msra.mxu0 0
      %622 = vmatprep.subr.bf16.mxu0 %v606
      %623 = vmatpush1.bf16.msra.mxu0 %v603
      %624 = vmatprep.subr.bf16.mxu0 0
      %625 = vmatpush2.bf16.msra.mxu0 0
      %626 = vmatprep.subr.bf16.mxu0 0
      %627 = vmatpush2.bf16.msra.mxu0 0
      %628 = vmatprep.subr.bf16.mxu0 0
      %629 = vmatpush2.bf16.msra.mxu0 0
      %630 = vmatprep.subr.bf16.mxu0 0
      %631 = vmatpush2.bf16.msra.mxu0 0
      %632 = vmatprep.subr.bf16.mxu0 0
      %633 = vmatpush2.bf16.msra.mxu0 0
      %634 = vmatprep.subr.bf16.mxu0 0
      %635 = vmatpush2.bf16.msra.mxu0 0
      %636 = vmatprep.subr.bf16.mxu0 0
      %637 = vmatpush2.bf16.msra.mxu0 0
      %638 = vmatprep.subr.bf16.mxu0 0
      %639 = vmatpush2.bf16.msra.mxu0 0
      %640 = vmatprep.mubr.bf16.mxu0 0
      %641 = vmatmul.mubr.bf16.gmra.mxu0 %v600
      %v642 = vpop.f32.mrf.mxu0
      %v643 = vadd.f32 0.0, %v642
      %v644 = vpop.f32.mrf.mxu0
      %v645 = vadd.f32 0.0, %v644
      %v646 = vpop.f32.mrf.mxu0
      %v647 = vadd.f32 0.0, %v646
      %v648 = vpop.f32.mrf.mxu0
      %v649 = vadd.f32 0.0, %v648
      %650 = vdwg.mxu0
      %v651 = vadd.f32 %v552, %v643
      %v652 = vadd.f32 %v554, %v645
      %v653 = vadd.f32 %v556, %v647
      %v654 = vadd.f32 %v558, %v649
      %655 = vrot.lane.b32.xlu0 %v413, 16
      %v656 = vpop.permute.xlu0 %655
      %v657 = vrot.slane %v656, 4
      %vm658 = vcmask 130048
      %v659 = vsel %vm658, %v657, %v656
      %v662 = vmul.bf16 %v408, %v659
      %v663 = vmul.bf16 %v418, %v657
      %s664 = scalar_lea.vmem %s1, 24
      %v665 = vld [vmem:[%s664] sm:$0xf]
      %v666 = vld [vmem:[%s664 + $0x4] sm:$0x3]
      %v669 = vunpack.c.l.b16 %v665
      %v670 = vunpack.c.l.b16 %v666
      %v671 = vpack.c.b16 %v670, %v669
      %v674 = vunpack.c.l.b16 %v662
      %v675 = vunpack.c.h.b16 %v662
      %v676 = vunpack.c.l.b16 %v663
      %v677 = vpack.c.b16 %v674, %v674
      %v678 = vpack.c.b16 %v675, %v675
      %v679 = vpack.c.b16 %v676, %v676
      %680 = vrot.lane.b32.xlu0 %v677, 112
      %v681 = vpop.permute.xlu0 %680
      %682 = vrot.lane.b32.xlu0 %v678, 112
      %v683 = vpop.permute.xlu0 %682
      %684 = vrot.lane.b32.xlu0 %v679, 112
      %v685 = vpop.permute.xlu0 %684
      %vm686 = vcmask 916480
      %v687 = vsel %vm686, %v681, %v683
      %v688 = vsel %vm686, %v683, %v685
      %v690 = vsel %vm444, %v671, 0
      %v693 = vsel %vm448, %v687, 0
      %v696 = vsel %vm448, %v688, 0
      %698 = vmatprep.subr.bf16.mxu0 0
      %699 = vmatpush1.bf16.msra.mxu0 0
      %700 = vmatprep.subr.bf16.mxu0 0
      %701 = vmatpush1.bf16.msra.mxu0 0
      %702 = vmatprep.subr.bf16.mxu0 0
      %703 = vmatpush1.bf16.msra.mxu0 0
      %704 = vmatprep.subr.bf16.mxu0 0
      %705 = vmatpush1.bf16.msra.mxu0 0
      %706 = vmatprep.subr.bf16.mxu0 0
      %707 = vmatpush1.bf16.msra.mxu0 0
      %708 = vmatprep.subr.bf16.mxu0 0
      %709 = vmatpush1.bf16.msra.mxu0 0
      %710 = vmatprep.subr.bf16.mxu0 0
      %711 = vmatpush1.bf16.msra.mxu0 0
      %712 = vmatprep.subr.bf16.mxu0 %v696
      %713 = vmatpush1.bf16.msra.mxu0 %v693
      %714 = vmatprep.subr.bf16.mxu0 0
      %715 = vmatpush2.bf16.msra.mxu0 0
      %716 = vmatprep.subr.bf16.mxu0 0
      %717 = vmatpush2.bf16.msra.mxu0 0
      %718 = vmatprep.subr.bf16.mxu0 0
      %719 = vmatpush2.bf16.msra.mxu0 0
      %720 = vmatprep.subr.bf16.mxu0 0
      %721 = vmatpush2.bf16.msra.mxu0 0
      %722 = vmatprep.subr.bf16.mxu0 0
      %723 = vmatpush2.bf16.msra.mxu0 0
      %724 = vmatprep.subr.bf16.mxu0 0
      %725 = vmatpush2.bf16.msra.mxu0 0
      %726 = vmatprep.subr.bf16.mxu0 0
      %727 = vmatpush2.bf16.msra.mxu0 0
      %728 = vmatprep.subr.bf16.mxu0 0
      %729 = vmatpush2.bf16.msra.mxu0 0
      %730 = vmatprep.mubr.bf16.mxu0 0
      %731 = vmatmul.mubr.bf16.gmra.mxu0 %v690
      %v732 = vpop.f32.mrf.mxu0
      %v733 = vadd.f32 0.0, %v732
      %v734 = vpop.f32.mrf.mxu0
      %v735 = vadd.f32 0.0, %v734
      %v736 = vpop.f32.mrf.mxu0
      %v737 = vadd.f32 0.0, %v736
      %v738 = vpop.f32.mrf.mxu0
      %v739 = vadd.f32 0.0, %v738
      %740 = vdwg.mxu0
      %v741 = vadd.f32 %v651, %v733
      %v742 = vadd.f32 %v652, %v735
      %v743 = vadd.f32 %v653, %v737
      %v744 = vadd.f32 %v654, %v739
      %s745 = scalar_lea.vmem %s1, 32
      %v746 = vld [vmem:[%s745] sm:$0xf]
      %v747 = vld [vmem:[%s745 + $0x4] sm:$0x3]
      %v750 = vunpack.c.l.b16 %v746
      %v751 = vunpack.c.l.b16 %v747
      %v752 = vpack.c.b16 %v751, %v750
      %753 = vrot.lane.b32.xlu0 %v432, 111
      %v754 = vpop.permute.xlu0 %753
      %755 = vrot.lane.b32.xlu0 %v433, 111
      %v756 = vpop.permute.xlu0 %755
      %757 = vrot.lane.b32.xlu0 %v434, 111
      %v758 = vpop.permute.xlu0 %757
      %vm759 = vcmask 908288
      %v760 = vsel %vm759, %v754, %v756
      %v761 = vsel %vm759, %v756, %v758
      %v763 = vsel %vm444, %v752, 0
      %v766 = vsel %vm448, %v760, 0
      %v769 = vsel %vm448, %v761, 0
      %771 = vmatprep.subr.bf16.mxu0 0
      %772 = vmatpush1.bf16.msra.mxu0 0
      %773 = vmatprep.subr.bf16.mxu0 0
      %774 = vmatpush1.bf16.msra.mxu0 0
      %775 = vmatprep.subr.bf16.mxu0 0
      %776 = vmatpush1.bf16.msra.mxu0 0
      %777 = vmatprep.subr.bf16.mxu0 0
      %778 = vmatpush1.bf16.msra.mxu0 0
      %779 = vmatprep.subr.bf16.mxu0 0
      %780 = vmatpush1.bf16.msra.mxu0 0
      %781 = vmatprep.subr.bf16.mxu0 0
      %782 = vmatpush1.bf16.msra.mxu0 0
      %783 = vmatprep.subr.bf16.mxu0 0
      %784 = vmatpush1.bf16.msra.mxu0 0
      %785 = vmatprep.subr.bf16.mxu0 %v769
      %786 = vmatpush1.bf16.msra.mxu0 %v766
      %787 = vmatprep.subr.bf16.mxu0 0
      %788 = vmatpush2.bf16.msra.mxu0 0
      %789 = vmatprep.subr.bf16.mxu0 0
      %790 = vmatpush2.bf16.msra.mxu0 0
      %791 = vmatprep.subr.bf16.mxu0 0
      %792 = vmatpush2.bf16.msra.mxu0 0
      %793 = vmatprep.subr.bf16.mxu0 0
      %794 = vmatpush2.bf16.msra.mxu0 0
      %795 = vmatprep.subr.bf16.mxu0 0
      %796 = vmatpush2.bf16.msra.mxu0 0
      %797 = vmatprep.subr.bf16.mxu0 0
      %798 = vmatpush2.bf16.msra.mxu0 0
      %799 = vmatprep.subr.bf16.mxu0 0
      %800 = vmatpush2.bf16.msra.mxu0 0
      %801 = vmatprep.subr.bf16.mxu0 0
      %802 = vmatpush2.bf16.msra.mxu0 0
      %803 = vmatprep.mubr.bf16.mxu0 0
      %804 = vmatmul.mubr.bf16.gmra.mxu0 %v763
      %v805 = vpop.f32.mrf.mxu0
      %v806 = vadd.f32 0.0, %v805
      %v807 = vpop.f32.mrf.mxu0
      %v808 = vadd.f32 0.0, %v807
      %v809 = vpop.f32.mrf.mxu0
      %v810 = vadd.f32 0.0, %v809
      %v811 = vpop.f32.mrf.mxu0
      %v812 = vadd.f32 0.0, %v811
      %813 = vdwg.mxu0
      %v814 = vadd.f32 %v741, %v806
      %v815 = vadd.f32 %v742, %v808
      %v816 = vadd.f32 %v743, %v810
      %v817 = vadd.f32 %v744, %v812
      %818 = vrot.lane.b32.xlu0 %v564, 18
      %v819 = vpop.permute.xlu0 %818
      %v820 = vrot.slane %v819, 4
      %vm821 = vcmask 146432
      %v822 = vsel %vm821, %v820, %v819
      %v825 = vmul.bf16 %v408, %v822
      %v826 = vmul.bf16 %v418, %v820
      %s827 = scalar_lea.vmem %s1, 40
      %v828 = vld [vmem:[%s827] sm:$0xf]
      %v829 = vld [vmem:[%s827 + $0x4] sm:$0x3]
      %v832 = vunpack.c.l.b16 %v828
      %v833 = vunpack.c.l.b16 %v829
      %v834 = vpack.c.b16 %v833, %v832
      %v837 = vunpack.c.l.b16 %v825
      %v838 = vunpack.c.h.b16 %v825
      %v839 = vunpack.c.l.b16 %v826
      %v840 = vpack.c.b16 %v837, %v837
      %v841 = vpack.c.b16 %v838, %v838
      %v842 = vpack.c.b16 %v839, %v839
      %843 = vrot.lane.b32.xlu0 %v840, 110
      %v844 = vpop.permute.xlu0 %843
      %845 = vrot.lane.b32.xlu0 %v841, 110
      %v846 = vpop.permute.xlu0 %845
      %847 = vrot.lane.b32.xlu0 %v842, 110
      %v848 = vpop.permute.xlu0 %847
      %vm849 = vcmask 900096
      %v850 = vsel %vm849, %v844, %v846
      %v851 = vsel %vm849, %v846, %v848
      %v853 = vsel %vm444, %v834, 0
      %v856 = vsel %vm448, %v850, 0
      %v859 = vsel %vm448, %v851, 0
      %861 = vmatprep.subr.bf16.mxu0 0
      %862 = vmatpush1.bf16.msra.mxu0 0
      %863 = vmatprep.subr.bf16.mxu0 0
      %864 = vmatpush1.bf16.msra.mxu0 0
      %865 = vmatprep.subr.bf16.mxu0 0
      %866 = vmatpush1.bf16.msra.mxu0 0
      %867 = vmatprep.subr.bf16.mxu0 0
      %868 = vmatpush1.bf16.msra.mxu0 0
      %869 = vmatprep.subr.bf16.mxu0 0
      %870 = vmatpush1.bf16.msra.mxu0 0
      %871 = vmatprep.subr.bf16.mxu0 0
      %872 = vmatpush1.bf16.msra.mxu0 0
      %873 = vmatprep.subr.bf16.mxu0 0
      %874 = vmatpush1.bf16.msra.mxu0 0
      %875 = vmatprep.subr.bf16.mxu0 %v859
      %876 = vmatpush1.bf16.msra.mxu0 %v856
      %877 = vmatprep.subr.bf16.mxu0 0
      %878 = vmatpush2.bf16.msra.mxu0 0
      %879 = vmatprep.subr.bf16.mxu0 0
      %880 = vmatpush2.bf16.msra.mxu0 0
      %881 = vmatprep.subr.bf16.mxu0 0
      %882 = vmatpush2.bf16.msra.mxu0 0
      %883 = vmatprep.subr.bf16.mxu0 0
      %884 = vmatpush2.bf16.msra.mxu0 0
      %885 = vmatprep.subr.bf16.mxu0 0
      %886 = vmatpush2.bf16.msra.mxu0 0
      %887 = vmatprep.subr.bf16.mxu0 0
      %888 = vmatpush2.bf16.msra.mxu0 0
      %889 = vmatprep.subr.bf16.mxu0 0
      %890 = vmatpush2.bf16.msra.mxu0 0
      %891 = vmatprep.subr.bf16.mxu0 0
      %892 = vmatpush2.bf16.msra.mxu0 0
      %893 = vmatprep.mubr.bf16.mxu0 0
      %894 = vmatmul.mubr.bf16.gmra.mxu0 %v853
      %v895 = vpop.f32.mrf.mxu0
      %v896 = vadd.f32 0.0, %v895
      %v897 = vpop.f32.mrf.mxu0
      %v898 = vadd.f32 0.0, %v897
      %v899 = vpop.f32.mrf.mxu0
      %v900 = vadd.f32 0.0, %v899
      %v901 = vpop.f32.mrf.mxu0
      %v902 = vadd.f32 0.0, %v901
      %903 = vdwg.mxu0
      %v904 = vadd.f32 %v814, %v896
      %v905 = vadd.f32 %v815, %v898
      %v906 = vadd.f32 %v816, %v900
      %v907 = vadd.f32 %v817, %v902
      %908 = vrot.lane.b32.xlu0 %v413, 32
      %v909 = vpop.permute.xlu0 %908
      %v910 = vrot.slane %v909, 4
      %vm911 = vcmask 261120
      %v912 = vsel %vm911, %v910, %v909
      %v915 = vmul.bf16 %v408, %v912
      %v916 = vmul.bf16 %v418, %v910
      %s917 = scalar_lea.vmem %s1, 48
      %v918 = vld [vmem:[%s917] sm:$0xf]
      %v919 = vld [vmem:[%s917 + $0x4] sm:$0x3]
      %v922 = vunpack.c.l.b16 %v918
      %v923 = vunpack.c.l.b16 %v919
      %v924 = vpack.c.b16 %v923, %v922
      %v927 = vunpack.c.l.b16 %v915
      %v928 = vunpack.c.h.b16 %v915
      %v929 = vunpack.c.l.b16 %v916
      %v930 = vpack.c.b16 %v927, %v927
      %v931 = vpack.c.b16 %v928, %v928
      %v932 = vpack.c.b16 %v929, %v929
      %933 = vrot.lane.b32.xlu0 %v930, 96
      %v934 = vpop.permute.xlu0 %933
      %935 = vrot.lane.b32.xlu0 %v931, 96
      %v936 = vpop.permute.xlu0 %935
      %937 = vrot.lane.b32.xlu0 %v932, 96
      %v938 = vpop.permute.xlu0 %937
      %vm939 = vcmask 785408
      %v940 = vsel %vm939, %v934, %v936
      %v941 = vsel %vm939, %v936, %v938
      %v943 = vsel %vm444, %v924, 0
      %v946 = vsel %vm448, %v940, 0
      %v949 = vsel %vm448, %v941, 0
      %951 = vmatprep.subr.bf16.mxu0 0
      %952 = vmatpush1.bf16.msra.mxu0 0
      %953 = vmatprep.subr.bf16.mxu0 0
      %954 = vmatpush1.bf16.msra.mxu0 0
      %955 = vmatprep.subr.bf16.mxu0 0
      %956 = vmatpush1.bf16.msra.mxu0 0
      %957 = vmatprep.subr.bf16.mxu0 0
      %958 = vmatpush1.bf16.msra.mxu0 0
      %959 = vmatprep.subr.bf16.mxu0 0
      %960 = vmatpush1.bf16.msra.mxu0 0
      %961 = vmatprep.subr.bf16.mxu0 0
      %962 = vmatpush1.bf16.msra.mxu0 0
      %963 = vmatprep.subr.bf16.mxu0 0
      %964 = vmatpush1.bf16.msra.mxu0 0
      %965 = vmatprep.subr.bf16.mxu0 %v949
      %966 = vmatpush1.bf16.msra.mxu0 %v946
      %967 = vmatprep.subr.bf16.mxu0 0
      %968 = vmatpush2.bf16.msra.mxu0 0
      %969 = vmatprep.subr.bf16.mxu0 0
      %970 = vmatpush2.bf16.msra.mxu0 0
      %971 = vmatprep.subr.bf16.mxu0 0
      %972 = vmatpush2.bf16.msra.mxu0 0
      %973 = vmatprep.subr.bf16.mxu0 0
      %974 = vmatpush2.bf16.msra.mxu0 0
      %975 = vmatprep.subr.bf16.mxu0 0
      %976 = vmatpush2.bf16.msra.mxu0 0
      %977 = vmatprep.subr.bf16.mxu0 0
      %978 = vmatpush2.bf16.msra.mxu0 0
      %979 = vmatprep.subr.bf16.mxu0 0
      %980 = vmatpush2.bf16.msra.mxu0 0
      %981 = vmatprep.subr.bf16.mxu0 0
      %982 = vmatpush2.bf16.msra.mxu0 0
      %983 = vmatprep.mubr.bf16.mxu0 0
      %984 = vmatmul.mubr.bf16.gmra.mxu0 %v943
      %v985 = vpop.f32.mrf.mxu0
      %v986 = vadd.f32 0.0, %v985
      %v987 = vpop.f32.mrf.mxu0
      %v988 = vadd.f32 0.0, %v987
      %v989 = vpop.f32.mrf.mxu0
      %v990 = vadd.f32 0.0, %v989
      %v991 = vpop.f32.mrf.mxu0
      %v992 = vadd.f32 0.0, %v991
      %993 = vdwg.mxu0
      %v994 = vadd.f32 %v904, %v986
      %v995 = vadd.f32 %v905, %v988
      %v996 = vadd.f32 %v906, %v990
      %v997 = vadd.f32 %v907, %v992
      %s998 = scalar_lea.vmem %s1, 56
      %v999 = vld [vmem:[%s998] sm:$0xf]
      %v1000 = vld [vmem:[%s998 + $0x4] sm:$0x3]
      %v1003 = vunpack.c.l.b16 %v999
      %v1004 = vunpack.c.l.b16 %v1000
      %v1005 = vpack.c.b16 %v1004, %v1003
      %1006 = vrot.lane.b32.xlu0 %v432, 95
      %v1007 = vpop.permute.xlu0 %1006
      %1008 = vrot.lane.b32.xlu0 %v433, 95
      %v1009 = vpop.permute.xlu0 %1008
      %1010 = vrot.lane.b32.xlu0 %v434, 95
      %v1011 = vpop.permute.xlu0 %1010
      %vm1012 = vcmask 777216
      %v1013 = vsel %vm1012, %v1007, %v1009
      %v1014 = vsel %vm1012, %v1009, %v1011
      %v1016 = vsel %vm444, %v1005, 0
      %v1019 = vsel %vm448, %v1013, 0
      %v1022 = vsel %vm448, %v1014, 0
      %1024 = vmatprep.subr.bf16.mxu0 0
      %1025 = vmatpush1.bf16.msra.mxu0 0
      %1026 = vmatprep.subr.bf16.mxu0 0
      %1027 = vmatpush1.bf16.msra.mxu0 0
      %1028 = vmatprep.subr.bf16.mxu0 0
      %1029 = vmatpush1.bf16.msra.mxu0 0
      %1030 = vmatprep.subr.bf16.mxu0 0
      %1031 = vmatpush1.bf16.msra.mxu0 0
      %1032 = vmatprep.subr.bf16.mxu0 0
      %1033 = vmatpush1.bf16.msra.mxu0 0
      %1034 = vmatprep.subr.bf16.mxu0 0
      %1035 = vmatpush1.bf16.msra.mxu0 0
      %1036 = vmatprep.subr.bf16.mxu0 0
      %1037 = vmatpush1.bf16.msra.mxu0 0
      %1038 = vmatprep.subr.bf16.mxu0 %v1022
      %1039 = vmatpush1.bf16.msra.mxu0 %v1019
      %1040 = vmatprep.subr.bf16.mxu0 0
      %1041 = vmatpush2.bf16.msra.mxu0 0
      %1042 = vmatprep.subr.bf16.mxu0 0
      %1043 = vmatpush2.bf16.msra.mxu0 0
      %1044 = vmatprep.subr.bf16.mxu0 0
      %1045 = vmatpush2.bf16.msra.mxu0 0
      %1046 = vmatprep.subr.bf16.mxu0 0
      %1047 = vmatpush2.bf16.msra.mxu0 0
      %1048 = vmatprep.subr.bf16.mxu0 0
      %1049 = vmatpush2.bf16.msra.mxu0 0
      %1050 = vmatprep.subr.bf16.mxu0 0
      %1051 = vmatpush2.bf16.msra.mxu0 0
      %1052 = vmatprep.subr.bf16.mxu0 0
      %1053 = vmatpush2.bf16.msra.mxu0 0
      %1054 = vmatprep.subr.bf16.mxu0 0
      %1055 = vmatpush2.bf16.msra.mxu0 0
      %1056 = vmatprep.mubr.bf16.mxu0 0
      %1057 = vmatmul.mubr.bf16.gmra.mxu0 %v1016
      %v1058 = vpop.f32.mrf.mxu0
      %v1059 = vadd.f32 0.0, %v1058
      %v1060 = vpop.f32.mrf.mxu0
      %v1061 = vadd.f32 0.0, %v1060
      %v1062 = vpop.f32.mrf.mxu0
      %v1063 = vadd.f32 0.0, %v1062
      %v1064 = vpop.f32.mrf.mxu0
      %v1065 = vadd.f32 0.0, %v1064
      %1066 = vdwg.mxu0
      %v1067 = vadd.f32 %v994, %v1059
      %v1068 = vadd.f32 %v995, %v1061
      %v1069 = vadd.f32 %v996, %v1063
      %v1070 = vadd.f32 %v997, %v1065
      %1071 = vrot.lane.b32.xlu0 %v564, 34
      %v1072 = vpop.permute.xlu0 %1071
      %v1073 = vrot.slane %v1072, 4
      %vm1074 = vcmask 277504
      %v1075 = vsel %vm1074, %v1073, %v1072
      %v1078 = vmul.bf16 %v408, %v1075
      %v1079 = vmul.bf16 %v418, %v1073
      %s1080 = scalar_lea.vmem %s1, 64
      %v1081 = vld [vmem:[%s1080] sm:$0xf]
      %v1082 = vld [vmem:[%s1080 + $0x4] sm:$0x3]
      %v1085 = vunpack.c.l.b16 %v1081
      %v1086 = vunpack.c.l.b16 %v1082
      %v1087 = vpack.c.b16 %v1086, %v1085
      %v1090 = vunpack.c.l.b16 %v1078
      %v1091 = vunpack.c.h.b16 %v1078
      %v1092 = vunpack.c.l.b16 %v1079
      %v1093 = vpack.c.b16 %v1090, %v1090
      %v1094 = vpack.c.b16 %v1091, %v1091
      %v1095 = vpack.c.b16 %v1092, %v1092
      %1096 = vrot.lane.b32.xlu0 %v1093, 94
      %v1097 = vpop.permute.xlu0 %1096
      %1098 = vrot.lane.b32.xlu0 %v1094, 94
      %v1099 = vpop.permute.xlu0 %1098
      %1100 = vrot.lane.b32.xlu0 %v1095, 94
      %v1101 = vpop.permute.xlu0 %1100
      %vm1102 = vcmask 769024
      %v1103 = vsel %vm1102, %v1097, %v1099
      %v1104 = vsel %vm1102, %v1099, %v1101
      %v1106 = vsel %vm444, %v1087, 0
      %v1109 = vsel %vm448, %v1103, 0
      %v1112 = vsel %vm448, %v1104, 0
      %1114 = vmatprep.subr.bf16.mxu0 0
      %1115 = vmatpush1.bf16.msra.mxu0 0
      %1116 = vmatprep.subr.bf16.mxu0 0
      %1117 = vmatpush1.bf16.msra.mxu0 0
      %1118 = vmatprep.subr.bf16.mxu0 0
      %1119 = vmatpush1.bf16.msra.mxu0 0
      %1120 = vmatprep.subr.bf16.mxu0 0
      %1121 = vmatpush1.bf16.msra.mxu0 0
      %1122 = vmatprep.subr.bf16.mxu0 0
      %1123 = vmatpush1.bf16.msra.mxu0 0
      %1124 = vmatprep.subr.bf16.mxu0 0
      %1125 = vmatpush1.bf16.msra.mxu0 0
      %1126 = vmatprep.subr.bf16.mxu0 0
      %1127 = vmatpush1.bf16.msra.mxu0 0
      %1128 = vmatprep.subr.bf16.mxu0 %v1112
      %1129 = vmatpush1.bf16.msra.mxu0 %v1109
      %1130 = vmatprep.subr.bf16.mxu0 0
      %1131 = vmatpush2.bf16.msra.mxu0 0
      %1132 = vmatprep.subr.bf16.mxu0 0
      %1133 = vmatpush2.bf16.msra.mxu0 0
      %1134 = vmatprep.subr.bf16.mxu0 0
      %1135 = vmatpush2.bf16.msra.mxu0 0
      %1136 = vmatprep.subr.bf16.mxu0 0
      %1137 = vmatpush2.bf16.msra.mxu0 0
      %1138 = vmatprep.subr.bf16.mxu0 0
      %1139 = vmatpush2.bf16.msra.mxu0 0
      %1140 = vmatprep.subr.bf16.mxu0 0
      %1141 = vmatpush2.bf16.msra.mxu0 0
      %1142 = vmatprep.subr.bf16.mxu0 0
      %1143 = vmatpush2.bf16.msra.mxu0 0
      %1144 = vmatprep.subr.bf16.mxu0 0
      %1145 = vmatpush2.bf16.msra.mxu0 0
      %1146 = vmatprep.mubr.bf16.mxu0 0
      %1147 = vmatmul.mubr.bf16.gmra.mxu0 %v1106
      %v1148 = vpop.f32.mrf.mxu0
      %v1149 = vadd.f32 0.0, %v1148
      %v1150 = vpop.f32.mrf.mxu0
      %v1151 = vadd.f32 0.0, %v1150
      %v1152 = vpop.f32.mrf.mxu0
      %v1153 = vadd.f32 0.0, %v1152
      %v1154 = vpop.f32.mrf.mxu0
      %v1155 = vadd.f32 0.0, %v1154
      %1156 = vdwg.mxu0
      %v1157 = vadd.f32 %v1067, %v1149
      %v1158 = vadd.f32 %v1068, %v1151
      %v1159 = vadd.f32 %v1069, %v1153
      %v1160 = vadd.f32 %v1070, %v1155
      %v1161 = vadd.f32 %v1157, %v1158
      %1162 = vadd.xlane.f32.xlu0 %v1161
      %v1163 = vpop.xlane.xlu0 %1162
      %vm1164 = vcmask 1043456
      %v1165 = vsel %vm1164, %v1159, 0.0
      %v1166 = vsel %vm1164, %v1160, 0.0
      %v1167 = vadd.f32 %v1165, %v1166
      %1168 = vadd.xlane.f32.xlu0 %v1167
      %v1169 = vpop.xlane.xlu0 %1168
      %v1170 = vmul.f32 %v1163, 0.00390625
      %v1171 = vmul.f32 %v1169, 0.00390625
      %v1172 = vsub.f32 %v1157, %v1170
      %v1173 = vsub.f32 %v1158, %v1170
      %v1174 = vsub.f32 %v1159, %v1171
      %v1175 = vsub.f32 %v1160, %v1171
      %v1176 = vmul.f32 %v1172, %v1172
      %v1177 = vmul.f32 %v1173, %v1173
      %v1178 = vmul.f32 %v1174, %v1174
      %v1179 = vmul.f32 %v1175, %v1175
      %v1180 = vadd.f32 %v1176, %v1177
      %1181 = vadd.xlane.f32.xlu0 %v1180
      %v1182 = vpop.xlane.xlu0 %1181
      %v1183 = vsel %vm1164, %v1178, 0.0
      %v1184 = vsel %vm1164, %v1179, 0.0
      %v1185 = vadd.f32 %v1183, %v1184
      %1186 = vadd.xlane.f32.xlu0 %v1185
      %v1187 = vpop.xlane.xlu0 %1186
      %v1188 = vmul.f32 %v1182, 0.00390625
      %v1189 = vmul.f32 %v1187, 0.00390625
      %v1190 = vld [vmem:[%s2] sm:$0xff]
      %v1191 = vld [vmem:[%s2 + $0x8] sm:$0xf]
      %v1192 = vld [vmem:[%s3] sm:$0xff]
      %v1193 = vld [vmem:[%s3 + $0x8] sm:$0xf]
      %v1194 = vmul.f32 %v1192, %v1188
      %v1195 = vmul.f32 %v1193, %v1189
      %v1196 = vadd.f32 %v1194, 1e-05
      %v1197 = vadd.f32 %v1195, 1e-05
      %v1198 = vrsqrt.pop %v1196
      %v1199 = vrsqrt.pop %v1197
      %v1200 = vmul.f32 %v1190, %v1198
      %v1201 = vmul.f32 %v1191, %v1199
      %1203 = vset.pattern.permute.xlu0 0
      %1204 = vperm.xlu0 %1203, %v1200
      %v1205 = vpop.permute.xlu0 %1204
      %1208 = vset.pattern.permute.xlu0 0
      %1209 = vperm.xlu0 %1208, %v1201
      %v1210 = vpop.permute.xlu0 %1209
      %v1212 = vmul.f32 %v1172, %v1205
      %v1213 = vmul.f32 %v1173, %v1205
      %v1214 = vmul.f32 %v1174, %v1210
      %v1215 = vmul.f32 %v1175, %v1210
      %v1216 = vld [vmem:[%s4] sm:$0xff]
      %v1217 = vld [vmem:[%s4 + $0x8] sm:$0xf]
      %1219 = vset.pattern.permute.xlu0 0
      %1220 = vperm.xlu0 %1219, %v1216
      %v1221 = vpop.permute.xlu0 %1220
      %1224 = vset.pattern.permute.xlu0 0
      %1225 = vperm.xlu0 %1224, %v1217
      %v1226 = vpop.permute.xlu0 %1225
      %v1228 = vadd.f32 %v1212, %v1221
      %v1229 = vadd.f32 %v1213, %v1221
      %v1230 = vadd.f32 %v1214, %v1226
      %v1231 = vadd.f32 %v1215, %v1226
      %vm1232 = vcmp.ge.f32.partialorder %v1228, 0.0
      %vm1233 = vcmp.ge.f32.partialorder %v1229, 0.0
      %vm1234 = vcmp.ge.f32.partialorder %v1230, 0.0
      %vm1235 = vcmp.ge.f32.partialorder %v1231, 0.0
      %v1236 = vmul.f32 %v1228, 0.01
      %v1237 = vmul.f32 %v1229, 0.01
      %v1238 = vmul.f32 %v1230, 0.01
      %v1239 = vmul.f32 %v1231, 0.01
      %v1240 = vsel %vm1232, %v1228, %v1236
      %v1241 = vsel %vm1233, %v1229, %v1237
      %v1242 = vsel %vm1234, %v1230, %v1238
      %v1243 = vsel %vm1235, %v1231, %v1239
      %v1244 = vpack.c.bf16 %v1242, %v1240
      %v1245 = vpack.c.bf16 %v1243, %v1241
      %v1248 = vunpack.c.l.b16 %v1244
      %v1249 = vunpack.c.l.b16 %v1245
      %v1250 = vunpack.c.h.b16 %v1244
      %v1251 = vunpack.c.h.b16 %v1245
      %v1252 = vpack.c.b16 %v1249, %v1248
      %v1253 = vpack.c.b16 %v1251, %v1250
      %1254 = vrot.lane.b32.xlu0 %v1252, 17
      %v1255 = vpop.permute.xlu0 %1254
      %1256 = vrot.lane.b32.xlu0 %v1253, 17
      %v1257 = vpop.permute.xlu0 %1256
      %v1258 = vrot.slane %v1255, 4
      %v1259 = vrot.slane %v1257, 4
      %v1260 = vsel %vm356, %v1258, %v1255
      %v1261 = vsel %vm356, %v1259, %v1257
      %vm1266 = vcmask 1043592
      %vm1267 = vcmask 1047556
      %vm1268 = vmor %vm1267, %vm1266
      %1269 = vst.msk [vmem:[#allocation2] sm:$0xff] %vm1268, %v1260
      %1270 = vst.msk [vmem:[#allocation2 + $0x8] sm:$0xf] %vm334, %v1258
      %1271 = vst.msk [vmem:[#allocation2 + $0xc] sm:$0x33] %vm362, %v1261
      %1272 = vst.msk [vmem:[#allocation2 + $0x14] sm:$0x3] %vm336, %v1259
      %v1273 = vld [vmem:[#allocation2] sm:$0xff]
      %v1274 = vld [vmem:[#allocation2 + $0xc] sm:$0x33]
      %v1275 = vmul.bf16 %v1273, %v413
      %v1276 = vmul.bf16 %v1274, %v413
      %v1277 = vld [vmem:[%s5] sm:$0xf]
      %v1278 = vld [vmem:[%s5 + $0x4] sm:$0x3]
      %v1279 = vld [vmem:[#allocation2 + $0x8] sm:$0xf]
      %v1280 = vld [vmem:[#allocation2 + $0x14] sm:$0x3]
      %s1281 = scalar_lea.vmem %s5, 8
      %v1282 = vld [vmem:[%s1281] sm:$0xf]
      %v1283 = vld [vmem:[%s1281 + $0x4] sm:$0x3]
      %v1286 = vunpack.c.l.b16 %v1282
      %v1287 = vunpack.c.l.b16 %v1283
      %v1288 = vpack.c.b16 %v1287, %v1286
      %v1293 = vunpack.c.l.b16 %v1273
      %v1294 = vunpack.c.h.b16 %v1273
      %v1295 = vunpack.c.l.b16 %v1279
      %v1296 = vunpack.c.l.b16 %v1274
      %v1297 = vunpack.c.h.b16 %v1274
      %v1298 = vunpack.c.l.b16 %v1280
      %v1299 = vpack.c.b16 %v1296, %v1293
      %v1300 = vpack.c.b16 %v1297, %v1294
      %v1301 = vpack.c.b16 %v1298, %v1295
      %1302 = vrot.lane.b32.xlu0 %v1299, 127
      %v1303 = vpop.permute.xlu0 %1302
      %1304 = vrot.lane.b32.xlu0 %v1300, 127
      %v1305 = vpop.permute.xlu0 %1304
      %1306 = vrot.lane.b32.xlu0 %v1301, 127
      %v1307 = vpop.permute.xlu0 %1306
      %v1308 = vsel %vm441, %v1303, %v1305
      %v1309 = vsel %vm441, %v1305, %v1307
      %vm1310 = vcmask 97280
      %v1312 = vsel %vm1310, %v1288, 0
      %vm1314 = vcmask 1045504
      %v1316 = vsel %vm1314, %v1308, 0
      %v1319 = vsel %vm1314, %v1309, 0
      %1321 = vmatprep.subr.bf16.mxu0 0
      %1322 = vmatpush1.bf16.msra.mxu0 0
      %1323 = vmatprep.subr.bf16.mxu0 0
      %1324 = vmatpush1.bf16.msra.mxu0 0
      %1325 = vmatprep.subr.bf16.mxu0 0
      %1326 = vmatpush1.bf16.msra.mxu0 0
      %1327 = vmatprep.subr.bf16.mxu0 0
      %1328 = vmatpush1.bf16.msra.mxu0 0
      %1329 = vmatprep.subr.bf16.mxu0 0
      %1330 = vmatpush1.bf16.msra.mxu0 0
      %1331 = vmatprep.subr.bf16.mxu0 0
      %1332 = vmatpush1.bf16.msra.mxu0 0
      %1333 = vmatprep.subr.bf16.mxu0 0
      %1334 = vmatpush1.bf16.msra.mxu0 0
      %1335 = vmatprep.subr.bf16.mxu0 %v1319
      %1336 = vmatpush1.bf16.msra.mxu0 %v1316
      %1337 = vmatprep.subr.bf16.mxu0 0
      %1338 = vmatpush2.bf16.msra.mxu0 0
      %1339 = vmatprep.subr.bf16.mxu0 0
      %1340 = vmatpush2.bf16.msra.mxu0 0
      %1341 = vmatprep.subr.bf16.mxu0 0
      %1342 = vmatpush2.bf16.msra.mxu0 0
      %1343 = vmatprep.subr.bf16.mxu0 0
      %1344 = vmatpush2.bf16.msra.mxu0 0
      %1345 = vmatprep.subr.bf16.mxu0 0
      %1346 = vmatpush2.bf16.msra.mxu0 0
      %1347 = vmatprep.subr.bf16.mxu0 0
      %1348 = vmatpush2.bf16.msra.mxu0 0
      %1349 = vmatprep.subr.bf16.mxu0 0
      %1350 = vmatpush2.bf16.msra.mxu0 0
      %1351 = vmatprep.subr.bf16.mxu0 0
      %1352 = vmatpush2.bf16.msra.mxu0 0
      %1353 = vmatprep.mubr.bf16.mxu0 0
      %1354 = vmatmul.mubr.bf16.gmra.mxu0 %v1312
      %v1355 = vpop.f32.mrf.mxu0
      %v1356 = vadd.f32 0.0, %v1355
      %v1357 = vpop.f32.mrf.mxu0
      %v1358 = vadd.f32 0.0, %v1357
      %v1359 = vpop.f32.mrf.mxu0
      %v1360 = vadd.f32 0.0, %v1359
      %v1361 = vpop.f32.mrf.mxu0
      %v1362 = vadd.f32 0.0, %v1361
      %1363 = vdwg.mxu0
      %v1366 = vunpack.c.l.b16 %v1277
      %v1367 = vunpack.c.l.b16 %v1278
      %v1368 = vpack.c.b16 %v1367, %v1366
      %v1371 = vunpack.c.l.b16 %v1275
      %v1372 = vunpack.c.h.b16 %v1275
      %v1373 = vunpack.c.l.b16 %v1276
      %v1374 = vunpack.c.h.b16 %v1276
      %v1375 = vpack.c.b16 %v1373, %v1371
      %v1376 = vpack.c.b16 %v1374, %v1372
      %v1378 = vsel %vm1310, %v1368, 0
      %v1381 = vsel %vm1314, %v1375, 0
      %v1384 = vsel %vm1314, %v1376, 0
      %1386 = vmatprep.subr.bf16.mxu0 0
      %1387 = vmatpush1.bf16.msra.mxu0 0
      %1388 = vmatprep.subr.bf16.mxu0 0
      %1389 = vmatpush1.bf16.msra.mxu0 0
      %1390 = vmatprep.subr.bf16.mxu0 0
      %1391 = vmatpush1.bf16.msra.mxu0 0
      %1392 = vmatprep.subr.bf16.mxu0 0
      %1393 = vmatpush1.bf16.msra.mxu0 0
      %1394 = vmatprep.subr.bf16.mxu0 0
      %1395 = vmatpush1.bf16.msra.mxu0 0
      %1396 = vmatprep.subr.bf16.mxu0 0
      %1397 = vmatpush1.bf16.msra.mxu0 0
      %1398 = vmatprep.subr.bf16.mxu0 0
      %1399 = vmatpush1.bf16.msra.mxu0 0
      %1400 = vmatprep.subr.bf16.mxu0 %v1384
      %1401 = vmatpush1.bf16.msra.mxu0 %v1381
      %1402 = vmatprep.subr.bf16.mxu0 0
      %1403 = vmatpush2.bf16.msra.mxu0 0
      %1404 = vmatprep.subr.bf16.mxu0 0
      %1405 = vmatpush2.bf16.msra.mxu0 0
      %1406 = vmatprep.subr.bf16.mxu0 0
      %1407 = vmatpush2.bf16.msra.mxu0 0
      %1408 = vmatprep.subr.bf16.mxu0 0
      %1409 = vmatpush2.bf16.msra.mxu0 0
      %1410 = vmatprep.subr.bf16.mxu0 0
      %1411 = vmatpush2.bf16.msra.mxu0 0
      %1412 = vmatprep.subr.bf16.mxu0 0
      %1413 = vmatpush2.bf16.msra.mxu0 0
      %1414 = vmatprep.subr.bf16.mxu0 0
      %1415 = vmatpush2.bf16.msra.mxu0 0
      %1416 = vmatprep.subr.bf16.mxu0 0
      %1417 = vmatpush2.bf16.msra.mxu0 0
      %1418 = vmatprep.mubr.bf16.mxu0 0
      %1419 = vmatmul.mubr.bf16.gmra.mxu0 %v1378
      %v1420 = vpop.f32.mrf.mxu0
      %v1421 = vadd.f32 %v1356, %v1420
      %v1422 = vpop.f32.mrf.mxu0
      %v1423 = vadd.f32 %v1358, %v1422
      %v1424 = vpop.f32.mrf.mxu0
      %v1425 = vadd.f32 %v1360, %v1424
      %v1426 = vpop.f32.mrf.mxu0
      %v1427 = vadd.f32 %v1362, %v1426
      %1428 = vdwg.mxu0
      %v1429 = vmul.bf16 %v1273, %v569
      %v1430 = vmul.bf16 %v1279, %v567
      %v1431 = vmul.bf16 %v1274, %v569
      %v1432 = vmul.bf16 %v1280, %v567
      %s1433 = scalar_lea.vmem %s5, 16
      %v1434 = vld [vmem:[%s1433] sm:$0xf]
      %v1435 = vld [vmem:[%s1433 + $0x4] sm:$0x3]
      %v1438 = vunpack.c.l.b16 %v1434
      %v1439 = vunpack.c.l.b16 %v1435
      %v1440 = vpack.c.b16 %v1439, %v1438
      %v1445 = vunpack.c.l.b16 %v1429
      %v1446 = vunpack.c.h.b16 %v1429
      %v1447 = vunpack.c.l.b16 %v1430
      %v1448 = vunpack.c.l.b16 %v1431
      %v1449 = vunpack.c.h.b16 %v1431
      %v1450 = vunpack.c.l.b16 %v1432
      %v1451 = vpack.c.b16 %v1448, %v1445
      %v1452 = vpack.c.b16 %v1449, %v1446
      %v1453 = vpack.c.b16 %v1450, %v1447
      %1454 = vrot.lane.b32.xlu0 %v1451, 126
      %v1455 = vpop.permute.xlu0 %1454
      %1456 = vrot.lane.b32.xlu0 %v1452, 126
      %v1457 = vpop.permute.xlu0 %1456
      %1458 = vrot.lane.b32.xlu0 %v1453, 126
      %v1459 = vpop.permute.xlu0 %1458
      %v1460 = vsel %vm596, %v1455, %v1457
      %v1461 = vsel %vm596, %v1457, %v1459
      %v1463 = vsel %vm1310, %v1440, 0
      %v1466 = vsel %vm1314, %v1460, 0
      %v1469 = vsel %vm1314, %v1461, 0
      %1471 = vmatprep.subr.bf16.mxu0 0
      %1472 = vmatpush1.bf16.msra.mxu0 0
      %1473 = vmatprep.subr.bf16.mxu0 0
      %1474 = vmatpush1.bf16.msra.mxu0 0
      %1475 = vmatprep.subr.bf16.mxu0 0
      %1476 = vmatpush1.bf16.msra.mxu0 0
      %1477 = vmatprep.subr.bf16.mxu0 0
      %1478 = vmatpush1.bf16.msra.mxu0 0
      %1479 = vmatprep.subr.bf16.mxu0 0
      %1480 = vmatpush1.bf16.msra.mxu0 0
      %1481 = vmatprep.subr.bf16.mxu0 0
      %1482 = vmatpush1.bf16.msra.mxu0 0
      %1483 = vmatprep.subr.bf16.mxu0 0
      %1484 = vmatpush1.bf16.msra.mxu0 0
      %1485 = vmatprep.subr.bf16.mxu0 %v1469
      %1486 = vmatpush1.bf16.msra.mxu0 %v1466
      %1487 = vmatprep.subr.bf16.mxu0 0
      %1488 = vmatpush2.bf16.msra.mxu0 0
      %1489 = vmatprep.subr.bf16.mxu0 0
      %1490 = vmatpush2.bf16.msra.mxu0 0
      %1491 = vmatprep.subr.bf16.mxu0 0
      %1492 = vmatpush2.bf16.msra.mxu0 0
      %1493 = vmatprep.subr.bf16.mxu0 0
      %1494 = vmatpush2.bf16.msra.mxu0 0
      %1495 = vmatprep.subr.bf16.mxu0 0
      %1496 = vmatpush2.bf16.msra.mxu0 0
      %1497 = vmatprep.subr.bf16.mxu0 0
      %1498 = vmatpush2.bf16.msra.mxu0 0
      %1499 = vmatprep.subr.bf16.mxu0 0
      %1500 = vmatpush2.bf16.msra.mxu0 0
      %1501 = vmatprep.subr.bf16.mxu0 0
      %1502 = vmatpush2.bf16.msra.mxu0 0
      %1503 = vmatprep.mubr.bf16.mxu0 0
      %1504 = vmatmul.mubr.bf16.gmra.mxu0 %v1463
      %v1505 = vpop.f32.mrf.mxu0
      %v1506 = vadd.f32 0.0, %v1505
      %v1507 = vpop.f32.mrf.mxu0
      %v1508 = vadd.f32 0.0, %v1507
      %v1509 = vpop.f32.mrf.mxu0
      %v1510 = vadd.f32 0.0, %v1509
      %v1511 = vpop.f32.mrf.mxu0
      %v1512 = vadd.f32 0.0, %v1511
      %1513 = vdwg.mxu0
      %v1514 = vadd.f32 %v1421, %v1506
      %v1515 = vadd.f32 %v1423, %v1508
      %v1516 = vadd.f32 %v1425, %v1510
      %v1517 = vadd.f32 %v1427, %v1512
      %v1518 = vmul.bf16 %v1273, %v659
      %v1519 = vmul.bf16 %v1279, %v657
      %v1520 = vmul.bf16 %v1274, %v659
      %v1521 = vmul.bf16 %v1280, %v657
      %s1522 = scalar_lea.vmem %s5, 24
      %v1523 = vld [vmem:[%s1522] sm:$0xf]
      %v1524 = vld [vmem:[%s1522 + $0x4] sm:$0x3]
      %v1527 = vunpack.c.l.b16 %v1523
      %v1528 = vunpack.c.l.b16 %v1524
      %v1529 = vpack.c.b16 %v1528, %v1527
      %v1534 = vunpack.c.l.b16 %v1518
      %v1535 = vunpack.c.h.b16 %v1518
      %v1536 = vunpack.c.l.b16 %v1519
      %v1537 = vunpack.c.l.b16 %v1520
      %v1538 = vunpack.c.h.b16 %v1520
      %v1539 = vunpack.c.l.b16 %v1521
      %v1540 = vpack.c.b16 %v1537, %v1534
      %v1541 = vpack.c.b16 %v1538, %v1535
      %v1542 = vpack.c.b16 %v1539, %v1536
      %1543 = vrot.lane.b32.xlu0 %v1540, 112
      %v1544 = vpop.permute.xlu0 %1543
      %1545 = vrot.lane.b32.xlu0 %v1541, 112
      %v1546 = vpop.permute.xlu0 %1545
      %1547 = vrot.lane.b32.xlu0 %v1542, 112
      %v1548 = vpop.permute.xlu0 %1547
      %v1549 = vsel %vm686, %v1544, %v1546
      %v1550 = vsel %vm686, %v1546, %v1548
      %v1552 = vsel %vm1310, %v1529, 0
      %v1555 = vsel %vm1314, %v1549, 0
      %v1558 = vsel %vm1314, %v1550, 0
      %1560 = vmatprep.subr.bf16.mxu0 0
      %1561 = vmatpush1.bf16.msra.mxu0 0
      %1562 = vmatprep.subr.bf16.mxu0 0
      %1563 = vmatpush1.bf16.msra.mxu0 0
      %1564 = vmatprep.subr.bf16.mxu0 0
      %1565 = vmatpush1.bf16.msra.mxu0 0
      %1566 = vmatprep.subr.bf16.mxu0 0
      %1567 = vmatpush1.bf16.msra.mxu0 0
      %1568 = vmatprep.subr.bf16.mxu0 0
      %1569 = vmatpush1.bf16.msra.mxu0 0
      %1570 = vmatprep.subr.bf16.mxu0 0
      %1571 = vmatpush1.bf16.msra.mxu0 0
      %1572 = vmatprep.subr.bf16.mxu0 0
      %1573 = vmatpush1.bf16.msra.mxu0 0
      %1574 = vmatprep.subr.bf16.mxu0 %v1558
      %1575 = vmatpush1.bf16.msra.mxu0 %v1555
      %1576 = vmatprep.subr.bf16.mxu0 0
      %1577 = vmatpush2.bf16.msra.mxu0 0
      %1578 = vmatprep.subr.bf16.mxu0 0
      %1579 = vmatpush2.bf16.msra.mxu0 0
      %1580 = vmatprep.subr.bf16.mxu0 0
      %1581 = vmatpush2.bf16.msra.mxu0 0
      %1582 = vmatprep.subr.bf16.mxu0 0
      %1583 = vmatpush2.bf16.msra.mxu0 0
      %1584 = vmatprep.subr.bf16.mxu0 0
      %1585 = vmatpush2.bf16.msra.mxu0 0
      %1586 = vmatprep.subr.bf16.mxu0 0
      %1587 = vmatpush2.bf16.msra.mxu0 0
      %1588 = vmatprep.subr.bf16.mxu0 0
      %1589 = vmatpush2.bf16.msra.mxu0 0
      %1590 = vmatprep.subr.bf16.mxu0 0
      %1591 = vmatpush2.bf16.msra.mxu0 0
      %1592 = vmatprep.mubr.bf16.mxu0 0
      %1593 = vmatmul.mubr.bf16.gmra.mxu0 %v1552
      %v1594 = vpop.f32.mrf.mxu0
      %v1595 = vadd.f32 0.0, %v1594
      %v1596 = vpop.f32.mrf.mxu0
      %v1597 = vadd.f32 0.0, %v1596
      %v1598 = vpop.f32.mrf.mxu0
      %v1599 = vadd.f32 0.0, %v1598
      %v1600 = vpop.f32.mrf.mxu0
      %v1601 = vadd.f32 0.0, %v1600
      %1602 = vdwg.mxu0
      %v1603 = vadd.f32 %v1514, %v1595
      %v1604 = vadd.f32 %v1515, %v1597
      %v1605 = vadd.f32 %v1516, %v1599
      %v1606 = vadd.f32 %v1517, %v1601
      %s1607 = scalar_lea.vmem %s5, 32
      %v1608 = vld [vmem:[%s1607] sm:$0xf]
      %v1609 = vld [vmem:[%s1607 + $0x4] sm:$0x3]
      %v1612 = vunpack.c.l.b16 %v1608
      %v1613 = vunpack.c.l.b16 %v1609
      %v1614 = vpack.c.b16 %v1613, %v1612
      %1615 = vrot.lane.b32.xlu0 %v1299, 111
      %v1616 = vpop.permute.xlu0 %1615
      %1617 = vrot.lane.b32.xlu0 %v1300, 111
      %v1618 = vpop.permute.xlu0 %1617
      %1619 = vrot.lane.b32.xlu0 %v1301, 111
      %v1620 = vpop.permute.xlu0 %1619
      %v1621 = vsel %vm759, %v1616, %v1618
      %v1622 = vsel %vm759, %v1618, %v1620
      %v1624 = vsel %vm1310, %v1614, 0
      %v1627 = vsel %vm1314, %v1621, 0
      %v1630 = vsel %vm1314, %v1622, 0
      %1632 = vmatprep.subr.bf16.mxu0 0
      %1633 = vmatpush1.bf16.msra.mxu0 0
      %1634 = vmatprep.subr.bf16.mxu0 0
      %1635 = vmatpush1.bf16.msra.mxu0 0
      %1636 = vmatprep.subr.bf16.mxu0 0
      %1637 = vmatpush1.bf16.msra.mxu0 0
      %1638 = vmatprep.subr.bf16.mxu0 0
      %1639 = vmatpush1.bf16.msra.mxu0 0
      %1640 = vmatprep.subr.bf16.mxu0 0
      %1641 = vmatpush1.bf16.msra.mxu0 0
      %1642 = vmatprep.subr.bf16.mxu0 0
      %1643 = vmatpush1.bf16.msra.mxu0 0
      %1644 = vmatprep.subr.bf16.mxu0 0
      %1645 = vmatpush1.bf16.msra.mxu0 0
      %1646 = vmatprep.subr.bf16.mxu0 %v1630
      %1647 = vmatpush1.bf16.msra.mxu0 %v1627
      %1648 = vmatprep.subr.bf16.mxu0 0
      %1649 = vmatpush2.bf16.msra.mxu0 0
      %1650 = vmatprep.subr.bf16.mxu0 0
      %1651 = vmatpush2.bf16.msra.mxu0 0
      %1652 = vmatprep.subr.bf16.mxu0 0
      %1653 = vmatpush2.bf16.msra.mxu0 0
      %1654 = vmatprep.subr.bf16.mxu0 0
      %1655 = vmatpush2.bf16.msra.mxu0 0
      %1656 = vmatprep.subr.bf16.mxu0 0
      %1657 = vmatpush2.bf16.msra.mxu0 0
      %1658 = vmatprep.subr.bf16.mxu0 0
      %1659 = vmatpush2.bf16.msra.mxu0 0
      %1660 = vmatprep.subr.bf16.mxu0 0
      %1661 = vmatpush2.bf16.msra.mxu0 0
      %1662 = vmatprep.subr.bf16.mxu0 0
      %1663 = vmatpush2.bf16.msra.mxu0 0
      %1664 = vmatprep.mubr.bf16.mxu0 0
      %1665 = vmatmul.mubr.bf16.gmra.mxu0 %v1624
      %v1666 = vpop.f32.mrf.mxu0
      %v1667 = vadd.f32 0.0, %v1666
      %v1668 = vpop.f32.mrf.mxu0
      %v1669 = vadd.f32 0.0, %v1668
      %v1670 = vpop.f32.mrf.mxu0
      %v1671 = vadd.f32 0.0, %v1670
      %v1672 = vpop.f32.mrf.mxu0
      %v1673 = vadd.f32 0.0, %v1672
      %1674 = vdwg.mxu0
      %v1675 = vadd.f32 %v1603, %v1667
      %v1676 = vadd.f32 %v1604, %v1669
      %v1677 = vadd.f32 %v1605, %v1671
      %v1678 = vadd.f32 %v1606, %v1673
      %v1679 = vmul.bf16 %v1273, %v822
      %v1680 = vmul.bf16 %v1279, %v820
      %v1681 = vmul.bf16 %v1274, %v822
      %v1682 = vmul.bf16 %v1280, %v820
      %s1683 = scalar_lea.vmem %s5, 40
      %v1684 = vld [vmem:[%s1683] sm:$0xf]
      %v1685 = vld [vmem:[%s1683 + $0x4] sm:$0x3]
      %v1688 = vunpack.c.l.b16 %v1684
      %v1689 = vunpack.c.l.b16 %v1685
      %v1690 = vpack.c.b16 %v1689, %v1688
      %v1695 = vunpack.c.l.b16 %v1679
      %v1696 = vunpack.c.h.b16 %v1679
      %v1697 = vunpack.c.l.b16 %v1680
      %v1698 = vunpack.c.l.b16 %v1681
      %v1699 = vunpack.c.h.b16 %v1681
      %v1700 = vunpack.c.l.b16 %v1682
      %v1701 = vpack.c.b16 %v1698, %v1695
      %v1702 = vpack.c.b16 %v1699, %v1696
      %v1703 = vpack.c.b16 %v1700, %v1697
      %1704 = vrot.lane.b32.xlu0 %v1701, 110
      %v1705 = vpop.permute.xlu0 %1704
      %1706 = vrot.lane.b32.xlu0 %v1702, 110
      %v1707 = vpop.permute.xlu0 %1706
      %1708 = vrot.lane.b32.xlu0 %v1703, 110
      %v1709 = vpop.permute.xlu0 %1708
      %v1710 = vsel %vm849, %v1705, %v1707
      %v1711 = vsel %vm849, %v1707, %v1709
      %v1713 = vsel %vm1310, %v1690, 0
      %v1716 = vsel %vm1314, %v1710, 0
      %v1719 = vsel %vm1314, %v1711, 0
      %1721 = vmatprep.subr.bf16.mxu0 0
      %1722 = vmatpush1.bf16.msra.mxu0 0
      %1723 = vmatprep.subr.bf16.mxu0 0
      %1724 = vmatpush1.bf16.msra.mxu0 0
      %1725 = vmatprep.subr.bf16.mxu0 0
      %1726 = vmatpush1.bf16.msra.mxu0 0
      %1727 = vmatprep.subr.bf16.mxu0 0
      %1728 = vmatpush1.bf16.msra.mxu0 0
      %1729 = vmatprep.subr.bf16.mxu0 0
      %1730 = vmatpush1.bf16.msra.mxu0 0
      %1731 = vmatprep.subr.bf16.mxu0 0
      %1732 = vmatpush1.bf16.msra.mxu0 0
      %1733 = vmatprep.subr.bf16.mxu0 0
      %1734 = vmatpush1.bf16.msra.mxu0 0
      %1735 = vmatprep.subr.bf16.mxu0 %v1719
      %1736 = vmatpush1.bf16.msra.mxu0 %v1716
      %1737 = vmatprep.subr.bf16.mxu0 0
      %1738 = vmatpush2.bf16.msra.mxu0 0
      %1739 = vmatprep.subr.bf16.mxu0 0
      %1740 = vmatpush2.bf16.msra.mxu0 0
      %1741 = vmatprep.subr.bf16.mxu0 0
      %1742 = vmatpush2.bf16.msra.mxu0 0
      %1743 = vmatprep.subr.bf16.mxu0 0
      %1744 = vmatpush2.bf16.msra.mxu0 0
      %1745 = vmatprep.subr.bf16.mxu0 0
      %1746 = vmatpush2.bf16.msra.mxu0 0
      %1747 = vmatprep.subr.bf16.mxu0 0
      %1748 = vmatpush2.bf16.msra.mxu0 0
      %1749 = vmatprep.subr.bf16.mxu0 0
      %1750 = vmatpush2.bf16.msra.mxu0 0
      %1751 = vmatprep.subr.bf16.mxu0 0
      %1752 = vmatpush2.bf16.msra.mxu0 0
      %1753 = vmatprep.mubr.bf16.mxu0 0
      %1754 = vmatmul.mubr.bf16.gmra.mxu0 %v1713
      %v1755 = vpop.f32.mrf.mxu0
      %v1756 = vadd.f32 0.0, %v1755
      %v1757 = vpop.f32.mrf.mxu0
      %v1758 = vadd.f32 0.0, %v1757
      %v1759 = vpop.f32.mrf.mxu0
      %v1760 = vadd.f32 0.0, %v1759
      %v1761 = vpop.f32.mrf.mxu0
      %v1762 = vadd.f32 0.0, %v1761
      %1763 = vdwg.mxu0
      %v1764 = vadd.f32 %v1675, %v1756
      %v1765 = vadd.f32 %v1676, %v1758
      %v1766 = vadd.f32 %v1677, %v1760
      %v1767 = vadd.f32 %v1678, %v1762
      %v1768 = vmul.bf16 %v1273, %v912
      %v1769 = vmul.bf16 %v1279, %v910
      %v1770 = vmul.bf16 %v1274, %v912
      %v1771 = vmul.bf16 %v1280, %v910
      %s1772 = scalar_lea.vmem %s5, 48
      %v1773 = vld [vmem:[%s1772] sm:$0xf]
      %v1774 = vld [vmem:[%s1772 + $0x4] sm:$0x3]
      %v1777 = vunpack.c.l.b16 %v1773
      %v1778 = vunpack.c.l.b16 %v1774
      %v1779 = vpack.c.b16 %v1778, %v1777
      %v1784 = vunpack.c.l.b16 %v1768
      %v1785 = vunpack.c.h.b16 %v1768
      %v1786 = vunpack.c.l.b16 %v1769
      %v1787 = vunpack.c.l.b16 %v1770
      %v1788 = vunpack.c.h.b16 %v1770
      %v1789 = vunpack.c.l.b16 %v1771
      %v1790 = vpack.c.b16 %v1787, %v1784
      %v1791 = vpack.c.b16 %v1788, %v1785
      %v1792 = vpack.c.b16 %v1789, %v1786
      %1793 = vrot.lane.b32.xlu0 %v1790, 96
      %v1794 = vpop.permute.xlu0 %1793
      %1795 = vrot.lane.b32.xlu0 %v1791, 96
      %v1796 = vpop.permute.xlu0 %1795
      %1797 = vrot.lane.b32.xlu0 %v1792, 96
      %v1798 = vpop.permute.xlu0 %1797
      %v1799 = vsel %vm939, %v1794, %v1796
      %v1800 = vsel %vm939, %v1796, %v1798
      %v1802 = vsel %vm1310, %v1779, 0
      %v1805 = vsel %vm1314, %v1799, 0
      %v1808 = vsel %vm1314, %v1800, 0
      %1810 = vmatprep.subr.bf16.mxu0 0
      %1811 = vmatpush1.bf16.msra.mxu0 0
      %1812 = vmatprep.subr.bf16.mxu0 0
      %1813 = vmatpush1.bf16.msra.mxu0 0
      %1814 = vmatprep.subr.bf16.mxu0 0
      %1815 = vmatpush1.bf16.msra.mxu0 0
      %1816 = vmatprep.subr.bf16.mxu0 0
      %1817 = vmatpush1.bf16.msra.mxu0 0
      %1818 = vmatprep.subr.bf16.mxu0 0
      %1819 = vmatpush1.bf16.msra.mxu0 0
      %1820 = vmatprep.subr.bf16.mxu0 0
      %1821 = vmatpush1.bf16.msra.mxu0 0
      %1822 = vmatprep.subr.bf16.mxu0 0
      %1823 = vmatpush1.bf16.msra.mxu0 0
      %1824 = vmatprep.subr.bf16.mxu0 %v1808
      %1825 = vmatpush1.bf16.msra.mxu0 %v1805
      %1826 = vmatprep.subr.bf16.mxu0 0
      %1827 = vmatpush2.bf16.msra.mxu0 0
      %1828 = vmatprep.subr.bf16.mxu0 0
      %1829 = vmatpush2.bf16.msra.mxu0 0
      %1830 = vmatprep.subr.bf16.mxu0 0
      %1831 = vmatpush2.bf16.msra.mxu0 0
      %1832 = vmatprep.subr.bf16.mxu0 0
      %1833 = vmatpush2.bf16.msra.mxu0 0
      %1834 = vmatprep.subr.bf16.mxu0 0
      %1835 = vmatpush2.bf16.msra.mxu0 0
      %1836 = vmatprep.subr.bf16.mxu0 0
      %1837 = vmatpush2.bf16.msra.mxu0 0
      %1838 = vmatprep.subr.bf16.mxu0 0
      %1839 = vmatpush2.bf16.msra.mxu0 0
      %1840 = vmatprep.subr.bf16.mxu0 0
      %1841 = vmatpush2.bf16.msra.mxu0 0
      %1842 = vmatprep.mubr.bf16.mxu0 0
      %1843 = vmatmul.mubr.bf16.gmra.mxu0 %v1802
      %v1844 = vpop.f32.mrf.mxu0
      %v1845 = vadd.f32 0.0, %v1844
      %v1846 = vpop.f32.mrf.mxu0
      %v1847 = vadd.f32 0.0, %v1846
      %v1848 = vpop.f32.mrf.mxu0
      %v1849 = vadd.f32 0.0, %v1848
      %v1850 = vpop.f32.mrf.mxu0
      %v1851 = vadd.f32 0.0, %v1850
      %1852 = vdwg.mxu0
      %v1853 = vadd.f32 %v1764, %v1845
      %v1854 = vadd.f32 %v1765, %v1847
      %v1855 = vadd.f32 %v1766, %v1849
      %v1856 = vadd.f32 %v1767, %v1851
      %s1857 = scalar_lea.vmem %s5, 56
      %v1858 = vld [vmem:[%s1857] sm:$0xf]
      %v1859 = vld [vmem:[%s1857 + $0x4] sm:$0x3]
      %v1862 = vunpack.c.l.b16 %v1858
      %v1863 = vunpack.c.l.b16 %v1859
      %v1864 = vpack.c.b16 %v1863, %v1862
      %1865 = vrot.lane.b32.xlu0 %v1299, 95
      %v1866 = vpop.permute.xlu0 %1865
      %1867 = vrot.lane.b32.xlu0 %v1300, 95
      %v1868 = vpop.permute.xlu0 %1867
      %1869 = vrot.lane.b32.xlu0 %v1301, 95
      %v1870 = vpop.permute.xlu0 %1869
      %v1871 = vsel %vm1012, %v1866, %v1868
      %v1872 = vsel %vm1012, %v1868, %v1870
      %v1874 = vsel %vm1310, %v1864, 0
      %v1877 = vsel %vm1314, %v1871, 0
      %v1880 = vsel %vm1314, %v1872, 0
      %1882 = vmatprep.subr.bf16.mxu0 0
      %1883 = vmatpush1.bf16.msra.mxu0 0
      %1884 = vmatprep.subr.bf16.mxu0 0
      %1885 = vmatpush1.bf16.msra.mxu0 0
      %1886 = vmatprep.subr.bf16.mxu0 0
      %1887 = vmatpush1.bf16.msra.mxu0 0
      %1888 = vmatprep.subr.bf16.mxu0 0
      %1889 = vmatpush1.bf16.msra.mxu0 0
      %1890 = vmatprep.subr.bf16.mxu0 0
      %1891 = vmatpush1.bf16.msra.mxu0 0
      %1892 = vmatprep.subr.bf16.mxu0 0
      %1893 = vmatpush1.bf16.msra.mxu0 0
      %1894 = vmatprep.subr.bf16.mxu0 0
      %1895 = vmatpush1.bf16.msra.mxu0 0
      %1896 = vmatprep.subr.bf16.mxu0 %v1880
      %1897 = vmatpush1.bf16.msra.mxu0 %v1877
      %1898 = vmatprep.subr.bf16.mxu0 0
      %1899 = vmatpush2.bf16.msra.mxu0 0
      %1900 = vmatprep.subr.bf16.mxu0 0
      %1901 = vmatpush2.bf16.msra.mxu0 0
      %1902 = vmatprep.subr.bf16.mxu0 0
      %1903 = vmatpush2.bf16.msra.mxu0 0
      %1904 = vmatprep.subr.bf16.mxu0 0
      %1905 = vmatpush2.bf16.msra.mxu0 0
      %1906 = vmatprep.subr.bf16.mxu0 0
      %1907 = vmatpush2.bf16.msra.mxu0 0
      %1908 = vmatprep.subr.bf16.mxu0 0
      %1909 = vmatpush2.bf16.msra.mxu0 0
      %1910 = vmatprep.subr.bf16.mxu0 0
      %1911 = vmatpush2.bf16.msra.mxu0 0
      %1912 = vmatprep.subr.bf16.mxu0 0
      %1913 = vmatpush2.bf16.msra.mxu0 0
      %1914 = vmatprep.mubr.bf16.mxu0 0
      %1915 = vmatmul.mubr.bf16.gmra.mxu0 %v1874
      %v1916 = vpop.f32.mrf.mxu0
      %v1917 = vadd.f32 0.0, %v1916
      %v1918 = vpop.f32.mrf.mxu0
      %v1919 = vadd.f32 0.0, %v1918
      %v1920 = vpop.f32.mrf.mxu0
      %v1921 = vadd.f32 0.0, %v1920
      %v1922 = vpop.f32.mrf.mxu0
      %v1923 = vadd.f32 0.0, %v1922
      %1924 = vdwg.mxu0
      %v1925 = vadd.f32 %v1853, %v1917
      %v1926 = vadd.f32 %v1854, %v1919
      %v1927 = vadd.f32 %v1855, %v1921
      %v1928 = vadd.f32 %v1856, %v1923
      %v1929 = vmul.bf16 %v1273, %v1075
      %v1930 = vmul.bf16 %v1279, %v1073
      %v1931 = vmul.bf16 %v1274, %v1075
      %v1932 = vmul.bf16 %v1280, %v1073
      %s1933 = scalar_lea.vmem %s5, 64
      %v1934 = vld [vmem:[%s1933] sm:$0xf]
      %v1935 = vld [vmem:[%s1933 + $0x4] sm:$0x3]
      %v1938 = vunpack.c.l.b16 %v1934
      %v1939 = vunpack.c.l.b16 %v1935
      %v1940 = vpack.c.b16 %v1939, %v1938
      %v1945 = vunpack.c.l.b16 %v1929
      %v1946 = vunpack.c.h.b16 %v1929
      %v1947 = vunpack.c.l.b16 %v1930
      %v1948 = vunpack.c.l.b16 %v1931
      %v1949 = vunpack.c.h.b16 %v1931
      %v1950 = vunpack.c.l.b16 %v1932
      %v1951 = vpack.c.b16 %v1948, %v1945
      %v1952 = vpack.c.b16 %v1949, %v1946
      %v1953 = vpack.c.b16 %v1950, %v1947
      %1954 = vrot.lane.b32.xlu0 %v1951, 94
      %v1955 = vpop.permute.xlu0 %1954
      %1956 = vrot.lane.b32.xlu0 %v1952, 94
      %v1957 = vpop.permute.xlu0 %1956
      %1958 = vrot.lane.b32.xlu0 %v1953, 94
      %v1959 = vpop.permute.xlu0 %1958
      %v1960 = vsel %vm1102, %v1955, %v1957
      %v1961 = vsel %vm1102, %v1957, %v1959
      %v1963 = vsel %vm1310, %v1940, 0
      %v1966 = vsel %vm1314, %v1960, 0
      %v1969 = vsel %vm1314, %v1961, 0
      %1971 = vmatprep.subr.bf16.mxu0 0
      %1972 = vmatpush1.bf16.msra.mxu0 0
      %1973 = vmatprep.subr.bf16.mxu0 0
      %1974 = vmatpush1.bf16.msra.mxu0 0
      %1975 = vmatprep.subr.bf16.mxu0 0
      %1976 = vmatpush1.bf16.msra.mxu0 0
      %1977 = vmatprep.subr.bf16.mxu0 0
      %1978 = vmatpush1.bf16.msra.mxu0 0
      %1979 = vmatprep.subr.bf16.mxu0 0
      %1980 = vmatpush1.bf16.msra.mxu0 0
      %1981 = vmatprep.subr.bf16.mxu0 0
      %1982 = vmatpush1.bf16.msra.mxu0 0
      %1983 = vmatprep.subr.bf16.mxu0 0
      %1984 = vmatpush1.bf16.msra.mxu0 0
      %1985 = vmatprep.subr.bf16.mxu0 %v1969
      %1986 = vmatpush1.bf16.msra.mxu0 %v1966
      %1987 = vmatprep.subr.bf16.mxu0 0
      %1988 = vmatpush2.bf16.msra.mxu0 0
      %1989 = vmatprep.subr.bf16.mxu0 0
      %1990 = vmatpush2.bf16.msra.mxu0 0
      %1991 = vmatprep.subr.bf16.mxu0 0
      %1992 = vmatpush2.bf16.msra.mxu0 0
      %1993 = vmatprep.subr.bf16.mxu0 0
      %1994 = vmatpush2.bf16.msra.mxu0 0
      %1995 = vmatprep.subr.bf16.mxu0 0
      %1996 = vmatpush2.bf16.msra.mxu0 0
      %1997 = vmatprep.subr.bf16.mxu0 0
      %1998 = vmatpush2.bf16.msra.mxu0 0
      %1999 = vmatprep.subr.bf16.mxu0 0
      %2000 = vmatpush2.bf16.msra.mxu0 0
      %2001 = vmatprep.subr.bf16.mxu0 0
      %2002 = vmatpush2.bf16.msra.mxu0 0
      %2003 = vmatprep.mubr.bf16.mxu0 0
      %2004 = vmatmul.mubr.bf16.gmra.mxu0 %v1963
      %v2005 = vpop.f32.mrf.mxu0
      %v2006 = vadd.f32 0.0, %v2005
      %v2007 = vpop.f32.mrf.mxu0
      %v2008 = vadd.f32 0.0, %v2007
      %v2009 = vpop.f32.mrf.mxu0
      %v2010 = vadd.f32 0.0, %v2009
      %v2011 = vpop.f32.mrf.mxu0
      %v2012 = vadd.f32 0.0, %v2011
      %2013 = vdwg.mxu0
      %v2014 = vadd.f32 %v1925, %v2006
      %v2015 = vadd.f32 %v1926, %v2008
      %v2016 = vadd.f32 %v1927, %v2010
      %v2017 = vadd.f32 %v1928, %v2012
      %v2018 = vadd.f32 %v2014, %v2015
      %2019 = vadd.xlane.f32.xlu0 %v2018
      %v2020 = vpop.xlane.xlu0 %2019
      %v2021 = vsel %vm1164, %v2016, 0.0
      %v2022 = vsel %vm1164, %v2017, 0.0
      %v2023 = vadd.f32 %v2021, %v2022
      %2024 = vadd.xlane.f32.xlu0 %v2023
      %v2025 = vpop.xlane.xlu0 %2024
      %v2026 = vmul.f32 %v2020, 0.00390625
      %v2027 = vmul.f32 %v2025, 0.00390625
      %v2028 = vsub.f32 %v2014, %v2026
      %v2029 = vsub.f32 %v2015, %v2026
      %v2030 = vsub.f32 %v2016, %v2027
      %v2031 = vsub.f32 %v2017, %v2027
      %v2032 = vmul.f32 %v2028, %v2028
      %v2033 = vmul.f32 %v2029, %v2029
      %v2034 = vmul.f32 %v2030, %v2030
      %v2035 = vmul.f32 %v2031, %v2031
      %v2036 = vadd.f32 %v2032, %v2033
      %2037 = vadd.xlane.f32.xlu0 %v2036
      %v2038 = vpop.xlane.xlu0 %2037
      %v2039 = vsel %vm1164, %v2034, 0.0
      %v2040 = vsel %vm1164, %v2035, 0.0
      %v2041 = vadd.f32 %v2039, %v2040
      %2042 = vadd.xlane.f32.xlu0 %v2041
      %v2043 = vpop.xlane.xlu0 %2042
      %v2044 = vmul.f32 %v2038, 0.00390625
      %v2045 = vmul.f32 %v2043, 0.00390625
      %v2046 = vld [vmem:[%s6] sm:$0xff]
      %v2047 = vld [vmem:[%s6 + $0x8] sm:$0xf]
      %v2048 = vld [vmem:[%s7] sm:$0xff]
      %v2049 = vld [vmem:[%s7 + $0x8] sm:$0xf]
      %v2050 = vmul.f32 %v2048, %v2044
      %v2051 = vmul.f32 %v2049, %v2045
      %v2052 = vadd.f32 %v2050, 1e-05
      %v2053 = vadd.f32 %v2051, 1e-05
      %v2054 = vrsqrt.pop %v2052
      %v2055 = vrsqrt.pop %v2053
      %v2056 = vmul.f32 %v2046, %v2054
      %v2057 = vmul.f32 %v2047, %v2055
      %2059 = vset.pattern.permute.xlu0 0
      %2060 = vperm.xlu0 %2059, %v2056
      %v2061 = vpop.permute.xlu0 %2060
      %2064 = vset.pattern.permute.xlu0 0
      %2065 = vperm.xlu0 %2064, %v2057
      %v2066 = vpop.permute.xlu0 %2065
      %v2068 = vmul.f32 %v2028, %v2061
      %v2069 = vmul.f32 %v2029, %v2061
      %v2070 = vmul.f32 %v2030, %v2066
      %v2071 = vmul.f32 %v2031, %v2066
      %v2072 = vld [vmem:[%s8] sm:$0xff]
      %v2073 = vld [vmem:[%s8 + $0x8] sm:$0xf]
      %2075 = vset.pattern.permute.xlu0 0
      %2076 = vperm.xlu0 %2075, %v2072
      %v2077 = vpop.permute.xlu0 %2076
      %2080 = vset.pattern.permute.xlu0 0
      %2081 = vperm.xlu0 %2080, %v2073
      %v2082 = vpop.permute.xlu0 %2081
      %v2084 = vadd.f32 %v2068, %v2077
      %v2085 = vadd.f32 %v2069, %v2077
      %v2086 = vadd.f32 %v2070, %v2082
      %v2087 = vadd.f32 %v2071, %v2082
      %vm2088 = vcmp.ge.f32.partialorder %v2084, 0.0
      %vm2089 = vcmp.ge.f32.partialorder %v2085, 0.0
      %vm2090 = vcmp.ge.f32.partialorder %v2086, 0.0
      %vm2091 = vcmp.ge.f32.partialorder %v2087, 0.0
      %v2092 = vmul.f32 %v2084, 0.01
      %v2093 = vmul.f32 %v2085, 0.01
      %v2094 = vmul.f32 %v2086, 0.01
      %v2095 = vmul.f32 %v2087, 0.01
      %v2096 = vsel %vm2088, %v2084, %v2092
      %v2097 = vsel %vm2089, %v2085, %v2093
      %v2098 = vsel %vm2090, %v2086, %v2094
      %v2099 = vsel %vm2091, %v2087, %v2095
      %2100 = vst [vmem:[%s332] sm:$0xff] %v2096
      %2101 = vst [vmem:[%s332 + $0x8] sm:$0xff] %v2097
      %2102 = vst [vmem:[%s332 + $0x10] sm:$0xf] %v2098
      %2103 = vst [vmem:[%s332 + $0x18] sm:$0xf] %v2099
      %p2104 = scmp.lt.s32.totalorder %s20, 1
      %s2105 = scalar_select %p2104, %s20, 1
      %s2106 = smul.addr %s2105, 4
      %s2107 = smul.addr %s2106, 8
      %s2108 = scalar_lea.vmem %s9, %s2107
      // Predicated region
      $region57: #{tpu_custom_call.1} parent=55 // pred_check
        %p2109 = pneg %p232
      $region58: #{tpu_custom_call.1} parent=55 // pred_check_branch
        %2111 = sbr.rel (%p2109) target = $region60
      $region59: #{tpu_custom_call.1} parent=55 // pred_region
        _
      $region60: #{tpu_custom_call.1} parent=55 // pred_fallthru
        _
    $region56: #{tpu_custom_call.1} parent=5 // pred_fallthru
      _
    %p2112 = scmp.le.s32.totalorder 2, %s15
    // Predicated region
    $region61: #{tpu_custom_call.1} parent=5 // pred_check
      %p2113 = pneg %p2112
    $region62: #{tpu_custom_call.1} parent=5 // pred_check_branch
      %2115 = sbr.rel (%p2113) target = $region64
    $region63: #{tpu_custom_call.1} parent=5 // pred_region
      %s2116 = ssub.s32 %s15, 2
      // Predicated region
      $region65: #{tpu_custom_call.1} parent=63 // pred_check
        %p2117 = pneg %p238
      $region66: #{tpu_custom_call.1} parent=63 // pred_check_branch
        %2119 = sbr.rel (%p2117) target = $region68
      $region67: #{tpu_custom_call.1} parent=63 // pred_region
        %p2120 = scmp.lt.s32.totalorder %s21, 1
        %s2121 = scalar_select %p2120, %s21, 1
        %s2122 = smul.addr %s2121, 4
        %s2123 = smul.addr %s2122, 8
        %s2124 = scalar_lea.vmem %s9, %s2123
      $region68: #{tpu_custom_call.1} parent=63 // pred_fallthru
        _
    $region64: #{tpu_custom_call.1} parent=5 // pred_fallthru
      _
  $region6: #{tpu_custom_call.1} parent=0 // loop_footer
    %s19 = sadd.s32 1, %s15
  $region7: #{tpu_custom_call.1} parent=0 // loop_footer_branch
    %14 = sbr.rel target = $region3
  $region8: #{tpu_custom_call.1} parent=0 // loop_exit
    _

</llo_original>
